<compile_context>
chip_gen: v6e
topology: v6e:2x2x1
jax: 0.10.0
libtpu: 0.0.40
codegen_flags: <defaults>
</compile_context>

<pallas_src>
import functools

import jax
import jax.numpy as jnp
from jax.experimental import pallas as pl
from jax.experimental.pallas import tpu as pltpu


def _st_joint_att_kernel(x_ref, m_ref, wtv_ref, btv_ref, r_ref, wf_ref,
                         shift_ref, o_ref, xm_ref, *, t_dim, v_dim):
    nb, C, TV = x_ref.shape
    TpV = t_dim + v_dim
    Ci2 = wtv_ref.shape[0]
    Ci = Ci2 // 2
    cdt = m_ref.dtype  # MXU compute dtype (bf16 by default, f32 for exact path)

    # --- Block-wide fused mean matmul --------------------------------------
    # View the whole block as (nb*C, TV) (free: C mult. of 8, TV mult. of 128)
    # and do ONE MXU-shaped matmul against the fused averaging matrix
    # M = [mean-over-V | mean-over-T]  ->  per-sample [x_t | x_v] of width T+V.
    x_all = x_ref[...].reshape(nb * C, TV).astype(cdt)
    xm_all = jnp.dot(x_all, m_ref[...],
                     preferred_element_type=jnp.float32)          # (nb*C, T+V)
    xm_ref[...] = xm_all.reshape(nb, C, TpV)                      # park in VMEM

    # --- Hoisted constants (broadcast_in_dim is not CSE'd by JAX) ----------
    wtv = wtv_ref[...]                                            # (2Ci, C)
    btv = jnp.broadcast_to(btv_ref[...], (Ci2, TpV))              # (2Ci, T+V)
    rt = r_ref[:t_dim, :]                                         # (T, TV)
    rv = r_ref[t_dim:, :]                                         # (V, TV)
    wf = wf_ref[...]                                              # (C, Ci), BN scale folded in
    shift = shift_ref[...]                                        # (C, 1)

    def process(i):
        xm = xm_ref[i].astype(cdt)                                # (C, T+V)
        # conv_t / conv_v fused into one tiny matmul; only the two diagonal
        # (Ci, T) / (Ci, V) blocks of the (2Ci, T+V) result are used.
        a = jax.nn.sigmoid(
            jnp.dot(wtv, xm, preferred_element_type=jnp.float32) + btv)
        a_t = a[:Ci, :t_dim].astype(cdt)                          # (Ci, T)
        a_v = a[Ci:, t_dim:].astype(cdt)                          # (Ci, V)
        # Outer-product broadcast over (T, V), kept lane-dense on T*V via the
        # constant expansion matmuls (rt repeats t over V, rv tiles v over T).
        att = (jnp.dot(a_t, rt, preferred_element_type=jnp.float32)
               * jnp.dot(a_v, rv, preferred_element_type=jnp.float32))  # (Ci, TV)
        # fcn 1x1 conv back to C (BN scale pre-folded into wf) + folded
        # conv-bias/BN shift, then HardSwish: z * relu6(z + 3) / 6.
        z = jnp.dot(wf, att.astype(cdt),
                    preferred_element_type=jnp.float32) + shift   # (C, TV)
        o_ref[i] = z * (jnp.clip(z + 3.0, 0.0, 6.0) * (1.0 / 6.0))

    if nb == 1:
        process(0)
    else:
        def body(i, carry):
            process(i)
            return carry
        # Moderate unroll (2): overlaps the tiny-MXU chains of two independent
        # samples without blowing vreg pressure (each sample keeps ~25 vregs live).
        jax.lax.fori_loop(0, nb, body, 0, unroll=2)


def _num_tensorcores():
    """Best-effort TensorCore-per-chip count (2 on v7x, 1 on v5e/v6e)."""
    try:
        kind = jax.devices()[0].device_kind.lower()
    except Exception:
        return 1
    return 2 if "v7" in kind else 1


def _choose_batching(n, bytes_per_sample, target_bytes, num_cores):
    """Pick samples-per-step `nb`, padded batch and grid-step count."""
    nb = max(1, target_bytes // bytes_per_sample)
    nb = min(nb, n)
    if num_cores > 1 and n >= num_cores:
        # Multi-TC chips: keep at least `num_cores` grid steps so every core
        # gets work.  (On single-TC v5e/v6e this rule would only shrink blocks.)
        nb = min(nb, max(1, n // num_cores))
    steps = -(-n // nb)
    if num_cores > 1 and n >= num_cores:
        # Even split across the TensorCores (avoid an idle core on the last step).
        steps = -(-steps // num_cores) * num_cores
    return nb, steps * nb, steps


def st_joint_att_3channel(x_nctv, params, eps=1e-5, block_bytes=4 << 20,
                          use_bf16_mxu=True, num_cores=None):
    """x_nctv: (N, C, T, V) float32, PyTorch NCHW convention."""
    N, C, T, V = x_nctv.shape
    Ci = params["wt"].shape[0]
    TV = T * V
    TpV = T + V
    cdt = jnp.bfloat16 if use_bf16_mxu else jnp.float32

    # Free contiguous collapse -- no transpose, no extra HBM traffic.
    x = x_nctv.reshape(N, C, TV).astype(jnp.float32)

    # Fused constant matrices (exact in bf16: entries are 0/1 and 1/16-style).
    eye_t = jnp.eye(T, dtype=jnp.float32)
    eye_v = jnp.eye(V, dtype=jnp.float32)
    m = jnp.concatenate(
        [jnp.repeat(eye_t, V, axis=0) * (1.0 / V),     # mean over V -> cols [:T]
         jnp.tile(eye_v, (T, 1)) * (1.0 / T)],         # mean over T -> cols [T:]
        axis=1).astype(cdt)                            # (TV, T+V)
    r = jnp.concatenate(
        [jnp.repeat(eye_t, V, axis=1),                 # repeat each t over V
         jnp.tile(eye_v, (1, T))],                     # tile v over T
        axis=0).astype(cdt)                            # (T+V, TV)

    # Fused conv_t/conv_v weight + bias.
    w_tv = jnp.concatenate([params["wt"], params["wv"]], axis=0).astype(cdt)   # (2Ci, C)
    b_tv = jnp.concatenate([params["bt"], params["bv"]],
                           axis=0).reshape(2 * Ci, 1).astype(jnp.float32)

    # Fold fcn-conv bias + BatchNorm (inference) into the fcn weight (scale)
    # and a per-channel shift.
    inv_std = 1.0 / jnp.sqrt(params["bn_var"] + eps)
    scale = (params["bn_gamma"] * inv_std).reshape(C, 1).astype(jnp.float32)
    shift = ((params["bf"] - params["bn_mean"]) * params["bn_gamma"] * inv_std
             + params["bn_beta"]).reshape(C, 1).astype(jnp.float32)
    wf_s = (params["wf"].astype(jnp.float32) * scale).astype(cdt)              # (C, Ci)

    # Generation-aware batching + padding (avoid the tiny-block cliff on odd N).
    bytes_per_sample = C * TV * 4
    if num_cores is None:
        num_cores = _num_tensorcores()
    nb, n_pad, steps = _choose_batching(N, bytes_per_sample, block_bytes, num_cores)
    if n_pad != N:
        x = jnp.pad(x, ((0, n_pad - N), (0, 0), (0, 0)))

    # Pipeline double-buffers x-in and out (~4x block) + bf16 temp + constants.
    vmem_limit = int(min(64 << 20,
                         max(32 << 20, 6 * nb * bytes_per_sample + (8 << 20))))

    kernel = functools.partial(_st_joint_att_kernel, t_dim=T, v_dim=V)
    out = pl.pallas_call(
        kernel,
        out_shape=jax.ShapeDtypeStruct((n_pad, C, TV), jnp.float32),
        grid_spec=pltpu.PrefetchScalarGridSpec(
            num_scalar_prefetch=0,
            grid=(steps,),
            in_specs=[
                pl.BlockSpec((nb, C, TV), lambda n: (n, 0, 0)),    # x block
                pl.BlockSpec((TV, TpV), lambda n: (0, 0)),         # fused mean matrix
                pl.BlockSpec((2 * Ci, C), lambda n: (0, 0)),       # [Wt; Wv]
                pl.BlockSpec((2 * Ci, 1), lambda n: (0, 0)),       # [bt; bv]
                pl.BlockSpec((TpV, TV), lambda n: (0, 0)),         # fused expansion matrix
                pl.BlockSpec((C, Ci), lambda n: (0, 0)),           # Wf * BN scale
                pl.BlockSpec((C, 1), lambda n: (0, 0)),            # BN shift (+bias)
            ],
            out_specs=pl.BlockSpec((nb, C, TV), lambda n: (n, 0, 0)),
            scratch_shapes=[pltpu.VMEM((nb, C, TpV), jnp.float32)],  # per-block means
        ),
        compiler_params=pltpu.CompilerParams(
            dimension_semantics=("parallel",),   # shards the batch axis across TCs on v7x
            vmem_limit_bytes=vmem_limit),
    )(x, m, w_tv, b_tv, r, wf_s, shift)

    return out[:N].reshape(N, C, T, V)


def _reference(x, p, eps=1e-5):
    """Pure-JAX reference mimicking the PyTorch forward (NCTV layout)."""
    x_t = jnp.mean(x, axis=3, keepdims=True)                       # (N,C,T,1)
    x_v = jnp.mean(x, axis=2, keepdims=True)                       # (N,C,1,V)
    a1 = jax.nn.sigmoid(jnp.einsum('oc,nctv->notv', p["wt"], x_t)
                        + p["bt"][None, :, None, None])
    a2 = jax.nn.sigmoid(jnp.einsum('oc,nctv->notv', p["wv"], x_v)
                        + p["bv"][None, :, None, None])
    att = a1 * a2                                                  # (N,Ci,T,V)
    y = (jnp.einsum('oc,nctv->notv', p["wf"], att)
         + p["bf"][None, :, None, None])
    inv_std = 1.0 / jnp.sqrt(p["bn_var"] + eps)
    y = ((y - p["bn_mean"][None, :, None, None])
         * (p["bn_gamma"] * inv_std)[None, :, None, None]
         + p["bn_beta"][None, :, None, None])
    return y * jnp.clip(y + 3.0, 0.0, 6.0) / 6.0


def _make_params(key, channel, reduct_ratio):
    inner = channel // reduct_ratio
    ks = jax.random.split(key, 10)
    return {
        "wt": 0.2 * jax.random.normal(ks[0], (inner, channel), jnp.float32),
        "bt": 0.1 * jax.random.normal(ks[1], (inner,), jnp.float32),
        "wv": 0.2 * jax.random.normal(ks[2], (inner, channel), jnp.float32),
        "bv": 0.1 * jax.random.normal(ks[3], (inner,), jnp.float32),
        "wf": 0.2 * jax.random.normal(ks[4], (channel, inner), jnp.float32),
        "bf": 0.1 * jax.random.normal(ks[5], (channel,), jnp.float32),
        "bn_gamma": 1.0 + 0.1 * jax.random.normal(ks[6], (channel,), jnp.float32),
        "bn_beta": 0.1 * jax.random.normal(ks[7], (channel,), jnp.float32),
        "bn_mean": 0.1 * jax.random.normal(ks[8], (channel,), jnp.float32),
        "bn_var": jax.random.uniform(ks[9], (channel,), jnp.float32, 0.5, 1.5),
    }


if __name__ == "__main__":
    N, C, T, V = 2, 64, 16, 16
    reduct_ratio = 4

    key = jax.random.PRNGKey(0)
    kx, kp = jax.random.split(key)
    x = jax.random.normal(kx, (N, C, T, V), jnp.float32)
    params = _make_params(kp, C, reduct_ratio)

    ref = _reference(x, params)

    # Exact path (f32 on the MXU) -- tight tolerance against the f32 reference.
    fn_f32 = jax.jit(functools.partial(st_joint_att_3channel, use_bf16_mxu=False))
    out_f32 = jax.block_until_ready(fn_f32(x, params))
    assert out_f32.shape == (N, C, T, V)
    err_f32 = float(jnp.max(jnp.abs(out_f32 - ref)))
    assert jnp.allclose(out_f32, ref, atol=2e-4, rtol=2e-4), err_f32

    # Default fast path (bf16 operands on the MXU, f32 accumulation/epilogue);
    # expected max abs error ~1e-2 vs the pure-f32 reference.
    fn_bf16 = jax.jit(st_joint_att_3channel)
    out_bf16 = jax.block_until_ready(fn_bf16(x, params))
    assert out_bf16.shape == (N, C, T, V)
    err_bf16 = float(jnp.max(jnp.abs(out_bf16 - ref)))
    assert jnp.allclose(out_bf16, ref, atol=5e-2, rtol=5e-2), err_bf16

    print("KERNEL_OK")
</pallas_src>

<mosaic_0001>
module attributes {stable_mosaic.version = 11 : i64} {
  func.func @_st_joint_att_kernel(%arg0: i32, %arg1: memref<2x64x256xf32, #tpu.memory_space<vmem>>, %arg2: memref<256x32xf32, #tpu.memory_space<vmem>>, %arg3: memref<32x64xf32, #tpu.memory_space<vmem>>, %arg4: memref<32x1xf32, #tpu.memory_space<vmem>>, %arg5: memref<32x256xf32, #tpu.memory_space<vmem>>, %arg6: memref<64x16xf32, #tpu.memory_space<vmem>>, %arg7: memref<64x1xf32, #tpu.memory_space<vmem>>, %arg8: memref<2x64x256xf32, #tpu.memory_space<vmem>>, %arg9: memref<2x64x32xf32, #tpu.memory_space<vmem>>) attributes {dimension_semantics = [#tpu.dimension_semantics<parallel>], iteration_bounds = array<i64: 1>, scalar_prefetch = 0 : i64, scratch_operands = 1 : i64, tpu.core_type = #tpu.core_type<tc>, window_params = [{transform_indices = @transform_0, window_bounds = array<i64: 2, 64, 256>}, {pipeline_mode = #tpu.pipeline_mode<synchronous>, transform_indices = @transform_1, window_bounds = array<i64: 256, 32>}, {pipeline_mode = #tpu.pipeline_mode<synchronous>, transform_indices = @transform_2, window_bounds = array<i64: 32, 64>}, {pipeline_mode = #tpu.pipeline_mode<synchronous>, transform_indices = @transform_3, window_bounds = array<i64: 32, 1>}, {pipeline_mode = #tpu.pipeline_mode<synchronous>, transform_indices = @transform_4, window_bounds = array<i64: 32, 256>}, {pipeline_mode = #tpu.pipeline_mode<synchronous>, transform_indices = @transform_5, window_bounds = array<i64: 64, 16>}, {pipeline_mode = #tpu.pipeline_mode<synchronous>, transform_indices = @transform_6, window_bounds = array<i64: 64, 1>}, {transform_indices = @transform_7, window_bounds = array<i64: 2, 64, 256>}]} {
    %c0 = arith.constant 0 : index
    %c0_0 = arith.constant 0 : index
    %c0_1 = arith.constant 0 : index
    %0 = vector.load %arg1[%c0, %c0_0, %c0_1] : memref<2x64x256xf32, #tpu.memory_space<vmem>>, vector<2x64x256xf32>
    %1 = vector.shape_cast %0 : vector<2x64x256xf32> to vector<128x256xf32>
    %c0_2 = arith.constant 0 : index
    %c0_3 = arith.constant 0 : index
    %2 = vector.load %arg2[%c0_2, %c0_3] : memref<256x32xf32, #tpu.memory_space<vmem>>, vector<256x32xf32>
    %cst = arith.constant dense<0.000000e+00> : vector<128x32xf32>
    %3 = tpu.matmul %1, %2, %cst {dimension_numbers = #tpu.dot_dimension_numbers<[1], [0], [0], [1], [0, 0, 1, 1], [], []>} : vector<128x256xf32>, vector<256x32xf32>, vector<128x32xf32> -> vector<128x32xf32>
    %4 = vector.shape_cast %3 : vector<128x32xf32> to vector<2x64x32xf32>
    %c0_4 = arith.constant 0 : index
    %c0_5 = arith.constant 0 : index
    %c0_6 = arith.constant 0 : index
    %5 = vector.load %arg9[%c0_4, %c0_5, %c0_6] : memref<2x64x32xf32, #tpu.memory_space<vmem>>, vector<2x64x32xf32>
    tpu.vector_store %arg9[%c0_4, %c0_5, %c0_6], %4 {strides = array<i32>} : memref<2x64x32xf32, #tpu.memory_space<vmem>>, vector<2x64x32xf32>,
    %c0_7 = arith.constant 0 : index
    %c0_8 = arith.constant 0 : index
    %6 = vector.load %arg3[%c0_7, %c0_8] : memref<32x64xf32, #tpu.memory_space<vmem>>, vector<32x64xf32>
    %c0_9 = arith.constant 0 : index
    %c0_10 = arith.constant 0 : index
    %7 = vector.load %arg4[%c0_9, %c0_10] : memref<32x1xf32, #tpu.memory_space<vmem>>, vector<32x1xf32>
    %8 = vector.shape_cast %7 : vector<32x1xf32> to vector<32x1xf32>
    %9 = vector.broadcast %8 : vector<32x1xf32> to vector<32x32xf32>
    %c0_11 = arith.constant 0 : index
    %c0_12 = arith.constant 0 : index
    %10 = vector.load %arg5[%c0_11, %c0_12] : memref<32x256xf32, #tpu.memory_space<vmem>>, vector<16x256xf32>
    %c16 = arith.constant 16 : index
    %c0_13 = arith.constant 0 : index
    %11 = vector.load %arg5[%c16, %c0_13] : memref<32x256xf32, #tpu.memory_space<vmem>>, vector<16x256xf32>
    %c0_14 = arith.constant 0 : index
    %c0_15 = arith.constant 0 : index
    %12 = vector.load %arg6[%c0_14, %c0_15] : memref<64x16xf32, #tpu.memory_space<vmem>>, vector<64x16xf32>
    %c0_16 = arith.constant 0 : index
    %c0_17 = arith.constant 0 : index
    %13 = vector.load %arg7[%c0_16, %c0_17] : memref<64x1xf32, #tpu.memory_space<vmem>>, vector<64x1xf32>
    %c0_i32 = arith.constant 0 : i32
    %14 = arith.index_cast %c0_i32 : i32 to index
    %c0_18 = arith.constant 0 : index
    %c0_19 = arith.constant 0 : index
    %15 = vector.load %arg9[%14, %c0_18, %c0_19] : memref<2x64x32xf32, #tpu.memory_space<vmem>>, vector<1x64x32xf32>
    %16 = vector.shape_cast %15 : vector<1x64x32xf32> to vector<64x32xf32>
    %cst_20 = arith.constant dense<0.000000e+00> : vector<32x32xf32>
    %17 = tpu.matmul %6, %16, %cst_20 {dimension_numbers = #tpu.dot_dimension_numbers<[1], [0], [0], [1], [0, 0, 1, 1], [], []>} : vector<32x64xf32>, vector<64x32xf32>, vector<32x32xf32> -> vector<32x32xf32>
    %18 = arith.addf %17, %9 : vector<32x32xf32>
    %19 = arith.negf %18 : vector<32x32xf32>
    %20 = math.exp %19 : vector<32x32xf32>
    %cst_21 = arith.constant 1.000000e+00 : f32
    %21 = vector.broadcast %cst_21 : f32 to vector<32x32xf32>
    %22 = arith.addf %21, %20 : vector<32x32xf32>
    %23 = arith.divf %21, %22 : vector<32x32xf32>
    %24 = vector.extract_strided_slice %23 {offsets = [0, 0], sizes = [16, 16], strides = [1, 1]} : vector<32x32xf32> to vector<16x16xf32>
    %25 = vector.extract_strided_slice %23 {offsets = [16, 16], sizes = [16, 16], strides = [1, 1]} : vector<32x32xf32> to vector<16x16xf32>
    %cst_22 = arith.constant dense<0.000000e+00> : vector<16x256xf32>
    %26 = tpu.matmul %24, %10, %cst_22 {dimension_numbers = #tpu.dot_dimension_numbers<[1], [0], [0], [1], [0, 0, 1, 1], [], []>} : vector<16x16xf32>, vector<16x256xf32>, vector<16x256xf32> -> vector<16x256xf32>
    %cst_23 = arith.constant dense<0.000000e+00> : vector<16x256xf32>
    %27 = tpu.matmul %25, %11, %cst_23 {dimension_numbers = #tpu.dot_dimension_numbers<[1], [0], [0], [1], [0, 0, 1, 1], [], []>} : vector<16x16xf32>, vector<16x256xf32>, vector<16x256xf32> -> vector<16x256xf32>
    %28 = arith.mulf %26, %27 : vector<16x256xf32>
    %cst_24 = arith.constant dense<0.000000e+00> : vector<64x256xf32>
    %29 = tpu.matmul %12, %28, %cst_24 {dimension_numbers = #tpu.dot_dimension_numbers<[1], [0], [0], [1], [0, 0, 1, 1], [], []>} : vector<64x16xf32>, vector<16x256xf32>, vector<64x256xf32> -> vector<64x256xf32>
    %30 = vector.broadcast %13 : vector<64x1xf32> to vector<64x256xf32>
    %31 = arith.addf %29, %30 : vector<64x256xf32>
    %cst_25 = arith.constant 3.000000e+00 : f32
    %32 = vector.broadcast %cst_25 : f32 to vector<64x256xf32>
    %33 = arith.addf %31, %32 : vector<64x256xf32>
    %cst_26 = arith.constant 0.000000e+00 : f32
    %cst_27 = arith.constant 6.000000e+00 : f32
    %34 = vector.broadcast %cst_26 : f32 to vector<64x256xf32>
    %35 = arith.maximumf %34, %33 : vector<64x256xf32>
    %36 = vector.broadcast %cst_27 : f32 to vector<64x256xf32>
    %37 = arith.minimumf %36, %35 : vector<64x256xf32>
    %cst_28 = arith.constant 0.166666672 : f32
    %38 = vector.broadcast %cst_28 : f32 to vector<64x256xf32>
    %39 = arith.mulf %37, %38 : vector<64x256xf32>
    %40 = arith.mulf %31, %39 : vector<64x256xf32>
    %41 = arith.index_cast %c0_i32 : i32 to index
    %c0_29 = arith.constant 0 : index
    %c0_30 = arith.constant 0 : index
    %42 = vector.load %arg8[%41, %c0_29, %c0_30] : memref<2x64x256xf32, #tpu.memory_space<vmem>>, vector<1x64x256xf32>
    %43 = vector.shape_cast %42 : vector<1x64x256xf32> to vector<64x256xf32>
    %44 = vector.shape_cast %40 : vector<64x256xf32> to vector<1x64x256xf32>
    tpu.vector_store %arg8[%41, %c0_29, %c0_30], %44 {strides = array<i32>} : memref<2x64x256xf32, #tpu.memory_space<vmem>>, vector<1x64x256xf32>,
    %c1_i32 = arith.constant 1 : i32
    %45 = arith.index_cast %c1_i32 : i32 to index
    %c0_31 = arith.constant 0 : index
    %c0_32 = arith.constant 0 : index
    %46 = vector.load %arg9[%45, %c0_31, %c0_32] : memref<2x64x32xf32, #tpu.memory_space<vmem>>, vector<1x64x32xf32>
    %47 = vector.shape_cast %46 : vector<1x64x32xf32> to vector<64x32xf32>
    %cst_33 = arith.constant dense<0.000000e+00> : vector<32x32xf32>
    %48 = tpu.matmul %6, %47, %cst_33 {dimension_numbers = #tpu.dot_dimension_numbers<[1], [0], [0], [1], [0, 0, 1, 1], [], []>} : vector<32x64xf32>, vector<64x32xf32>, vector<32x32xf32> -> vector<32x32xf32>
    %49 = arith.addf %48, %9 : vector<32x32xf32>
    %50 = arith.negf %49 : vector<32x32xf32>
    %51 = math.exp %50 : vector<32x32xf32>
    %cst_34 = arith.constant 1.000000e+00 : f32
    %52 = vector.broadcast %cst_34 : f32 to vector<32x32xf32>
    %53 = arith.addf %52, %51 : vector<32x32xf32>
    %54 = arith.divf %52, %53 : vector<32x32xf32>
    %55 = vector.extract_strided_slice %54 {offsets = [0, 0], sizes = [16, 16], strides = [1, 1]} : vector<32x32xf32> to vector<16x16xf32>
    %56 = vector.extract_strided_slice %54 {offsets = [16, 16], sizes = [16, 16], strides = [1, 1]} : vector<32x32xf32> to vector<16x16xf32>
    %cst_35 = arith.constant dense<0.000000e+00> : vector<16x256xf32>
    %57 = tpu.matmul %55, %10, %cst_35 {dimension_numbers = #tpu.dot_dimension_numbers<[1], [0], [0], [1], [0, 0, 1, 1], [], []>} : vector<16x16xf32>, vector<16x256xf32>, vector<16x256xf32> -> vector<16x256xf32>
    %cst_36 = arith.constant dense<0.000000e+00> : vector<16x256xf32>
    %58 = tpu.matmul %56, %11, %cst_36 {dimension_numbers = #tpu.dot_dimension_numbers<[1], [0], [0], [1], [0, 0, 1, 1], [], []>} : vector<16x16xf32>, vector<16x256xf32>, vector<16x256xf32> -> vector<16x256xf32>
    %59 = arith.mulf %57, %58 : vector<16x256xf32>
    %cst_37 = arith.constant dense<0.000000e+00> : vector<64x256xf32>
    %60 = tpu.matmul %12, %59, %cst_37 {dimension_numbers = #tpu.dot_dimension_numbers<[1], [0], [0], [1], [0, 0, 1, 1], [], []>} : vector<64x16xf32>, vector<16x256xf32>, vector<64x256xf32> -> vector<64x256xf32>
    %61 = vector.broadcast %13 : vector<64x1xf32> to vector<64x256xf32>
    %62 = arith.addf %60, %61 : vector<64x256xf32>
    %cst_38 = arith.constant 3.000000e+00 : f32
    %63 = vector.broadcast %cst_38 : f32 to vector<64x256xf32>
    %64 = arith.addf %62, %63 : vector<64x256xf32>
    %cst_39 = arith.constant 0.000000e+00 : f32
    %cst_40 = arith.constant 6.000000e+00 : f32
    %65 = vector.broadcast %cst_39 : f32 to vector<64x256xf32>
    %66 = arith.maximumf %65, %64 : vector<64x256xf32>
    %67 = vector.broadcast %cst_40 : f32 to vector<64x256xf32>
    %68 = arith.minimumf %67, %66 : vector<64x256xf32>
    %cst_41 = arith.constant 0.166666672 : f32
    %69 = vector.broadcast %cst_41 : f32 to vector<64x256xf32>
    %70 = arith.mulf %68, %69 : vector<64x256xf32>
    %71 = arith.mulf %62, %70 : vector<64x256xf32>
    %72 = arith.index_cast %c1_i32 : i32 to index
    %c0_42 = arith.constant 0 : index
    %c0_43 = arith.constant 0 : index
    %73 = vector.load %arg8[%72, %c0_42, %c0_43] : memref<2x64x256xf32, #tpu.memory_space<vmem>>, vector<1x64x256xf32>
    %74 = vector.shape_cast %73 : vector<1x64x256xf32> to vector<64x256xf32>
    %75 = vector.shape_cast %71 : vector<64x256xf32> to vector<1x64x256xf32>
    tpu.vector_store %arg8[%72, %c0_42, %c0_43], %75 {strides = array<i32>} : memref<2x64x256xf32, #tpu.memory_space<vmem>>, vector<1x64x256xf32>,
    %c2_i32 = arith.constant 2 : i32
    return
  }
  func.func @transform_0(%arg0: i32) -> (i32, i32, i32) {
    %c0_i32 = arith.constant 0 : i32
    %c0_i32_0 = arith.constant 0 : i32
    %c0_i32_1 = arith.constant 0 : i32
    return %arg0, %c0_i32, %c0_i32_0 : i32, i32, i32
  }
  func.func @transform_1(%arg0: i32) -> (i32, i32) {
    %c0_i32 = arith.constant 0 : i32
    %c0_i32_0 = arith.constant 0 : i32
    %c0_i32_1 = arith.constant 0 : i32
    return %c0_i32, %c0_i32_0 : i32, i32
  }
  func.func @transform_2(%arg0: i32) -> (i32, i32) {
    %c0_i32 = arith.constant 0 : i32
    %c0_i32_0 = arith.constant 0 : i32
    %c0_i32_1 = arith.constant 0 : i32
    return %c0_i32, %c0_i32_0 : i32, i32
  }
  func.func @transform_3(%arg0: i32) -> (i32, i32) {
    %c0_i32 = arith.constant 0 : i32
    %c0_i32_0 = arith.constant 0 : i32
    %c0_i32_1 = arith.constant 0 : i32
    return %c0_i32, %c0_i32_0 : i32, i32
  }
  func.func @transform_4(%arg0: i32) -> (i32, i32) {
    %c0_i32 = arith.constant 0 : i32
    %c0_i32_0 = arith.constant 0 : i32
    %c0_i32_1 = arith.constant 0 : i32
    return %c0_i32, %c0_i32_0 : i32, i32
  }
  func.func @transform_5(%arg0: i32) -> (i32, i32) {
    %c0_i32 = arith.constant 0 : i32
    %c0_i32_0 = arith.constant 0 : i32
    %c0_i32_1 = arith.constant 0 : i32
    return %c0_i32, %c0_i32_0 : i32, i32
  }
  func.func @transform_6(%arg0: i32) -> (i32, i32) {
    %c0_i32 = arith.constant 0 : i32
    %c0_i32_0 = arith.constant 0 : i32
    %c0_i32_1 = arith.constant 0 : i32
    return %c0_i32, %c0_i32_0 : i32, i32
  }
  func.func @transform_7(%arg0: i32) -> (i32, i32, i32) {
    %c0_i32 = arith.constant 0 : i32
    %c0_i32_0 = arith.constant 0 : i32
    %c0_i32_1 = arith.constant 0 : i32
    return %arg0, %c0_i32, %c0_i32_0 : i32, i32, i32
  }
}

</mosaic_0001>

<llo_original>
// kernel: st_joint_att_3channel.1
$region0: #{st_joint_att_3channel.1}
  #allocation0 [shape = 'u32[]', space=smem, size = 0x4, offset = 0x4, fixed_abs, tag = 'smem constant byte address 0x4 - core index']
  #allocation1 [shape = 'u32[144,128]{1,0:T(1,128)}', space=vmem, size = 0x12000, scoped, tag = 'internal scratch']
  #allocation2 [shape = 'f32[2,64,32]{2,1,0:T(8,128)}', space=vmem, size = 0x10000, scoped, tag = 'scratch operand']
  %s0 = inlined_call_operand.vmem [shape: f32[2,64,256], index: 0, kind: input, shape index: {}]
  %s1 = inlined_call_operand.vmem [shape: f32[256,32], index: 1, kind: input, shape index: {}]
  %s2 = inlined_call_operand.vmem [shape: f32[32,64], index: 2, kind: input, shape index: {}]
  %s3 = inlined_call_operand.vmem [shape: f32[32,1], index: 3, kind: input, shape index: {}]
  %s4 = inlined_call_operand.vmem [shape: f32[32,256], index: 4, kind: input, shape index: {}]
  %s5 = inlined_call_operand.vmem [shape: f32[64,16], index: 5, kind: input, shape index: {}]
  %s6 = inlined_call_operand.vmem [shape: f32[64,1], index: 6, kind: input, shape index: {}]
  %s7 = inlined_call_operand.vmem [shape: f32[2,64,256], index: 7, kind: output, shape index: {}]
  %s8 = sld [smem:[#allocation0]]
  $region38: #{st_joint_att_3channel.1} parent=0
    _
  %s10 = ssub.s32 1, %s8
  %s11 = scalar_select 0, %s10, %s8
  // Predicated region
  $region2: #{st_joint_att_3channel.1} parent=0 // pred_check
    _
  $region3: #{st_joint_att_3channel.1} parent=0 // pred_check_branch
    %13 = sbr.rel (0) target = $region5
  $region4: #{st_joint_att_3channel.1} parent=0 // pred_region
    _
  $region5: #{st_joint_att_3channel.1} parent=0 // pred_fallthru
    _
  // Predicated region
  $region6: #{st_joint_att_3channel.1} parent=0 // pred_check
    _
  $region7: #{st_joint_att_3channel.1} parent=0 // pred_check_branch
    %15 = sbr.rel (0) target = $region9
  $region8: #{st_joint_att_3channel.1} parent=0 // pred_region
    _
  $region9: #{st_joint_att_3channel.1} parent=0 // pred_fallthru
    _
  // Predicated region
  $region10: #{st_joint_att_3channel.1} parent=0 // pred_check
    _
  $region11: #{st_joint_att_3channel.1} parent=0 // pred_check_branch
    %17 = sbr.rel (0) target = $region13
  $region12: #{st_joint_att_3channel.1} parent=0 // pred_region
    _
  $region13: #{st_joint_att_3channel.1} parent=0 // pred_fallthru
    _
  // Predicated region
  $region14: #{st_joint_att_3channel.1} parent=0 // pred_check
    _
  $region15: #{st_joint_att_3channel.1} parent=0 // pred_check_branch
    %19 = sbr.rel (0) target = $region17
  $region16: #{st_joint_att_3channel.1} parent=0 // pred_region
    _
  $region17: #{st_joint_att_3channel.1} parent=0 // pred_fallthru
    _
  // Predicated region
  $region18: #{st_joint_att_3channel.1} parent=0 // pred_check
    _
  $region19: #{st_joint_att_3channel.1} parent=0 // pred_check_branch
    %21 = sbr.rel (0) target = $region21
  $region20: #{st_joint_att_3channel.1} parent=0 // pred_region
    _
  $region21: #{st_joint_att_3channel.1} parent=0 // pred_fallthru
    _
  // Predicated region
  $region22: #{st_joint_att_3channel.1} parent=0 // pred_check
    _
  $region23: #{st_joint_att_3channel.1} parent=0 // pred_check_branch
    %23 = sbr.rel (0) target = $region25
  $region24: #{st_joint_att_3channel.1} parent=0 // pred_region
    _
  $region25: #{st_joint_att_3channel.1} parent=0 // pred_fallthru
    _
  // Predicated region
  $region26: #{st_joint_att_3channel.1} parent=0 // pred_check
    _
  $region27: #{st_joint_att_3channel.1} parent=0 // pred_check_branch
    %25 = sbr.rel (0) target = $region29
  $region28: #{st_joint_att_3channel.1} parent=0 // pred_region
    _
  $region29: #{st_joint_att_3channel.1} parent=0 // pred_fallthru
    _
  %v26 = vld [vmem:[%s0] sm:$0xff]
  %v27 = vld [vmem:[%s0 + $0x8] sm:$0xff]
  %v28 = vld [vmem:[%s0 + $0x10] sm:$0xff]
  %v29 = vld [vmem:[%s0 + $0x18] sm:$0xff]
  %v30 = vld [vmem:[%s0 + $0x20] sm:$0xff]
  %v31 = vld [vmem:[%s0 + $0x28] sm:$0xff]
  %v32 = vld [vmem:[%s0 + $0x30] sm:$0xff]
  %v33 = vld [vmem:[%s0 + $0x38] sm:$0xff]
  %v34 = vld [vmem:[%s0 + $0x40] sm:$0xff]
  %v35 = vld [vmem:[%s0 + $0x48] sm:$0xff]
  %v36 = vld [vmem:[%s0 + $0x50] sm:$0xff]
  %v37 = vld [vmem:[%s0 + $0x58] sm:$0xff]
  %v38 = vld [vmem:[%s0 + $0x60] sm:$0xff]
  %v39 = vld [vmem:[%s0 + $0x68] sm:$0xff]
  %v40 = vld [vmem:[%s0 + $0x70] sm:$0xff]
  %v41 = vld [vmem:[%s0 + $0x78] sm:$0xff]
  %v42 = vld [vmem:[%s0 + $0x80] sm:$0xff]
  %v43 = vld [vmem:[%s0 + $0x88] sm:$0xff]
  %v44 = vld [vmem:[%s0 + $0x90] sm:$0xff]
  %v45 = vld [vmem:[%s0 + $0x98] sm:$0xff]
  %v46 = vld [vmem:[%s0 + $0xa0] sm:$0xff]
  %v47 = vld [vmem:[%s0 + $0xa8] sm:$0xff]
  %v48 = vld [vmem:[%s0 + $0xb0] sm:$0xff]
  %v49 = vld [vmem:[%s0 + $0xb8] sm:$0xff]
  %v50 = vld [vmem:[%s0 + $0xc0] sm:$0xff]
  %v51 = vld [vmem:[%s0 + $0xc8] sm:$0xff]
  %v52 = vld [vmem:[%s0 + $0xd0] sm:$0xff]
  %v53 = vld [vmem:[%s0 + $0xd8] sm:$0xff]
  %v54 = vld [vmem:[%s0 + $0xe0] sm:$0xff]
  %v55 = vld [vmem:[%s0 + $0xe8] sm:$0xff]
  %v56 = vld [vmem:[%s0 + $0xf0] sm:$0xff]
  %v57 = vld [vmem:[%s0 + $0xf8] sm:$0xff]
  %v58 = vld [vmem:[%s1] sm:$0xff]
  %v59 = vld [vmem:[%s1 + $0x8] sm:$0xff]
  %v60 = vld [vmem:[%s1 + $0x10] sm:$0xff]
  %v61 = vld [vmem:[%s1 + $0x18] sm:$0xff]
  %v62 = vld [vmem:[%s1 + $0x20] sm:$0xff]
  %v63 = vld [vmem:[%s1 + $0x28] sm:$0xff]
  %v64 = vld [vmem:[%s1 + $0x30] sm:$0xff]
  %v65 = vld [vmem:[%s1 + $0x38] sm:$0xff]
  %v66 = vld [vmem:[%s1 + $0x40] sm:$0xff]
  %v67 = vld [vmem:[%s1 + $0x48] sm:$0xff]
  %v68 = vld [vmem:[%s1 + $0x50] sm:$0xff]
  %v69 = vld [vmem:[%s1 + $0x58] sm:$0xff]
  %v70 = vld [vmem:[%s1 + $0x60] sm:$0xff]
  %v71 = vld [vmem:[%s1 + $0x68] sm:$0xff]
  %v72 = vld [vmem:[%s1 + $0x70] sm:$0xff]
  %v73 = vld [vmem:[%s1 + $0x78] sm:$0xff]
  %v74 = vld [vmem:[%s1 + $0x80] sm:$0xff]
  %v75 = vld [vmem:[%s1 + $0x88] sm:$0xff]
  %v76 = vld [vmem:[%s1 + $0x90] sm:$0xff]
  %v77 = vld [vmem:[%s1 + $0x98] sm:$0xff]
  %v78 = vld [vmem:[%s1 + $0xa0] sm:$0xff]
  %v79 = vld [vmem:[%s1 + $0xa8] sm:$0xff]
  %v80 = vld [vmem:[%s1 + $0xb0] sm:$0xff]
  %v81 = vld [vmem:[%s1 + $0xb8] sm:$0xff]
  %v82 = vld [vmem:[%s1 + $0xc0] sm:$0xff]
  %v83 = vld [vmem:[%s1 + $0xc8] sm:$0xff]
  %v84 = vld [vmem:[%s1 + $0xd0] sm:$0xff]
  %v85 = vld [vmem:[%s1 + $0xd8] sm:$0xff]
  %v86 = vld [vmem:[%s1 + $0xe0] sm:$0xff]
  %v87 = vld [vmem:[%s1 + $0xe8] sm:$0xff]
  %v88 = vld [vmem:[%s1 + $0xf0] sm:$0xff]
  %v89 = vld [vmem:[%s1 + $0xf8] sm:$0xff]
  %90 = vmatprep.subr.mxu0 0.0
  %91 = vmatpush1.msra.mxu0 %v73
  %92 = vmatprep.subr.mxu0 0.0
  %93 = vmatpush1.msra.mxu0 %v72
  %94 = vmatprep.subr.mxu0 0.0
  %95 = vmatpush1.msra.mxu0 %v71
  %96 = vmatprep.subr.mxu0 0.0
  %97 = vmatpush1.msra.mxu0 %v70
  %98 = vmatprep.subr.mxu0 0.0
  %99 = vmatpush1.msra.mxu0 %v69
  %100 = vmatprep.subr.mxu0 0.0
  %101 = vmatpush1.msra.mxu0 %v68
  %102 = vmatprep.subr.mxu0 0.0
  %103 = vmatpush1.msra.mxu0 %v67
  %104 = vmatprep.subr.mxu0 0.0
  %105 = vmatpush1.msra.mxu0 %v66
  %106 = vmatprep.subr.mxu0 0.0
  %107 = vmatpush1.msra.mxu0 %v65
  %108 = vmatprep.subr.mxu0 0.0
  %109 = vmatpush1.msra.mxu0 %v64
  %110 = vmatprep.subr.mxu0 0.0
  %111 = vmatpush1.msra.mxu0 %v63
  %112 = vmatprep.subr.mxu0 0.0
  %113 = vmatpush1.msra.mxu0 %v62
  %114 = vmatprep.subr.mxu0 0.0
  %115 = vmatpush1.msra.mxu0 %v61
  %116 = vmatprep.subr.mxu0 0.0
  %117 = vmatpush1.msra.mxu0 %v60
  %118 = vmatprep.subr.mxu0 0.0
  %119 = vmatpush1.msra.mxu0 %v59
  %120 = vmatprep.subr.mxu0 0.0
  %121 = vmatpush1.msra.mxu0 %v58
  %122 = vmatprep.subr.mxu0 0.0
  %123 = vmatpush2.msra.mxu0 %v89
  %124 = vmatprep.subr.mxu0 0.0
  %125 = vmatpush2.msra.mxu0 %v88
  %126 = vmatprep.subr.mxu0 0.0
  %127 = vmatpush2.msra.mxu0 %v87
  %128 = vmatprep.subr.mxu0 0.0
  %129 = vmatpush2.msra.mxu0 %v86
  %130 = vmatprep.subr.mxu0 0.0
  %131 = vmatpush2.msra.mxu0 %v85
  %132 = vmatprep.subr.mxu0 0.0
  %133 = vmatpush2.msra.mxu0 %v84
  %134 = vmatprep.subr.mxu0 0.0
  %135 = vmatpush2.msra.mxu0 %v83
  %136 = vmatprep.subr.mxu0 0.0
  %137 = vmatpush2.msra.mxu0 %v82
  %138 = vmatprep.subr.mxu0 0.0
  %139 = vmatpush2.msra.mxu0 %v81
  %140 = vmatprep.subr.mxu0 0.0
  %141 = vmatpush2.msra.mxu0 %v80
  %142 = vmatprep.subr.mxu0 0.0
  %143 = vmatpush2.msra.mxu0 %v79
  %144 = vmatprep.subr.mxu0 0.0
  %145 = vmatpush2.msra.mxu0 %v78
  %146 = vmatprep.subr.mxu0 0.0
  %147 = vmatpush2.msra.mxu0 %v77
  %148 = vmatprep.subr.mxu0 0.0
  %149 = vmatpush2.msra.mxu0 %v76
  %150 = vmatprep.subr.mxu0 0.0
  %151 = vmatpush2.msra.mxu0 %v75
  %152 = vmatprep.subr.mxu0 0.0
  %153 = vmatpush2.msra.mxu0 %v74
  %154 = vmatprep.mubr.f32.mxu0 %v27
  %155 = vmatmul.mubr.f32.gmra.mxu0 %v26
  %v156 = vpop.f32.mrf.mxu0
  %v157 = vadd.f32 0.0, %v156
  %v158 = vpop.f32.mrf.mxu0
  %159 = vmatprep.mubr.f32.mxu0 %v29
  %160 = vmatmul.mubr.f32.gmra.mxu0 %v28
  %v161 = vpop.f32.mrf.mxu0
  %v162 = vadd.f32 0.0, %v161
  %v163 = vpop.f32.mrf.mxu0
  %164 = vmatprep.mubr.f32.mxu0 %v31
  %165 = vmatmul.mubr.f32.gmra.mxu0 %v30
  %v166 = vpop.f32.mrf.mxu0
  %v167 = vadd.f32 0.0, %v166
  %v168 = vpop.f32.mrf.mxu0
  %169 = vmatprep.mubr.f32.mxu0 %v33
  %170 = vmatmul.mubr.f32.gmra.mxu0 %v32
  %v171 = vpop.f32.mrf.mxu0
  %v172 = vadd.f32 0.0, %v171
  %v173 = vpop.f32.mrf.mxu0
  %174 = vmatprep.mubr.f32.mxu0 %v35
  %175 = vmatmul.mubr.f32.gmra.mxu0 %v34
  %v176 = vpop.f32.mrf.mxu0
  %v177 = vadd.f32 0.0, %v176
  %v178 = vpop.f32.mrf.mxu0
  %179 = vmatprep.mubr.f32.mxu0 %v37
  %180 = vmatmul.mubr.f32.gmra.mxu0 %v36
  %v181 = vpop.f32.mrf.mxu0
  %v182 = vadd.f32 0.0, %v181
  %v183 = vpop.f32.mrf.mxu0
  %184 = vmatprep.mubr.f32.mxu0 %v39
  %185 = vmatmul.mubr.f32.gmra.mxu0 %v38
  %v186 = vpop.f32.mrf.mxu0
  %v187 = vadd.f32 0.0, %v186
  %v188 = vpop.f32.mrf.mxu0
  %189 = vmatprep.mubr.f32.mxu0 %v41
  %190 = vmatmul.mubr.f32.gmra.mxu0 %v40
  %v191 = vpop.f32.mrf.mxu0
  %v192 = vadd.f32 0.0, %v191
  %v193 = vpop.f32.mrf.mxu0
  %194 = vmatprep.mubr.f32.mxu0 %v43
  %195 = vmatmul.mubr.f32.gmra.mxu0 %v42
  %v196 = vpop.f32.mrf.mxu0
  %v197 = vadd.f32 0.0, %v196
  %v198 = vpop.f32.mrf.mxu0
  %199 = vmatprep.mubr.f32.mxu0 %v45
  %200 = vmatmul.mubr.f32.gmra.mxu0 %v44
  %v201 = vpop.f32.mrf.mxu0
  %v202 = vadd.f32 0.0, %v201
  %v203 = vpop.f32.mrf.mxu0
  %204 = vmatprep.mubr.f32.mxu0 %v47
  %205 = vmatmul.mubr.f32.gmra.mxu0 %v46
  %v206 = vpop.f32.mrf.mxu0
  %v207 = vadd.f32 0.0, %v206
  %v208 = vpop.f32.mrf.mxu0
  %209 = vmatprep.mubr.f32.mxu0 %v49
  %210 = vmatmul.mubr.f32.gmra.mxu0 %v48
  %v211 = vpop.f32.mrf.mxu0
  %v212 = vadd.f32 0.0, %v211
  %v213 = vpop.f32.mrf.mxu0
  %214 = vmatprep.mubr.f32.mxu0 %v51
  %215 = vmatmul.mubr.f32.gmra.mxu0 %v50
  %v216 = vpop.f32.mrf.mxu0
  %v217 = vadd.f32 0.0, %v216
  %v218 = vpop.f32.mrf.mxu0
  %219 = vmatprep.mubr.f32.mxu0 %v53
  %220 = vmatmul.mubr.f32.gmra.mxu0 %v52
  %v221 = vpop.f32.mrf.mxu0
  %v222 = vadd.f32 0.0, %v221
  %v223 = vpop.f32.mrf.mxu0
  %224 = vmatprep.mubr.f32.mxu0 %v55
  %225 = vmatmul.mubr.f32.gmra.mxu0 %v54
  %v226 = vpop.f32.mrf.mxu0
  %v227 = vadd.f32 0.0, %v226
  %v228 = vpop.f32.mrf.mxu0
  %229 = vmatprep.mubr.f32.mxu0 %v57
  %230 = vmatmul.mubr.f32.gmra.mxu0 %v56
  %v231 = vpop.f32.mrf.mxu0
  %v232 = vadd.f32 0.0, %v231
  %v233 = vpop.f32.mrf.mxu0
  %234 = vdwg.mxu0
  %vm235 = vcmask 261120
  %236 = vst.msk [vmem:[#allocation2] sm:$0xff] %vm235, %v157
  %237 = vst.msk [vmem:[#allocation2 + $0x8] sm:$0xff] %vm235, %v162
  %238 = vst.msk [vmem:[#allocation2 + $0x10] sm:$0xff] %vm235, %v167
  %239 = vst.msk [vmem:[#allocation2 + $0x18] sm:$0xff] %vm235, %v172
  %240 = vst.msk [vmem:[#allocation2 + $0x20] sm:$0xff] %vm235, %v177
  %241 = vst.msk [vmem:[#allocation2 + $0x28] sm:$0xff] %vm235, %v182
  %242 = vst.msk [vmem:[#allocation2 + $0x30] sm:$0xff] %vm235, %v187
  %243 = vst.msk [vmem:[#allocation2 + $0x38] sm:$0xff] %vm235, %v192
  %244 = vst.msk [vmem:[#allocation2 + $0x40] sm:$0xff] %vm235, %v197
  %245 = vst.msk [vmem:[#allocation2 + $0x48] sm:$0xff] %vm235, %v202
  %246 = vst.msk [vmem:[#allocation2 + $0x50] sm:$0xff] %vm235, %v207
  %247 = vst.msk [vmem:[#allocation2 + $0x58] sm:$0xff] %vm235, %v212
  %248 = vst.msk [vmem:[#allocation2 + $0x60] sm:$0xff] %vm235, %v217
  %249 = vst.msk [vmem:[#allocation2 + $0x68] sm:$0xff] %vm235, %v222
  %250 = vst.msk [vmem:[#allocation2 + $0x70] sm:$0xff] %vm235, %v227
  %251 = vst.msk [vmem:[#allocation2 + $0x78] sm:$0xff] %vm235, %v232
  %v252 = vld [vmem:[%s2] sm:$0xff]
  %v253 = vld [vmem:[%s2 + $0x8] sm:$0xff]
  %v254 = vld [vmem:[%s2 + $0x10] sm:$0xff]
  %v255 = vld [vmem:[%s2 + $0x18] sm:$0xff]
  %v256 = vld [vmem:[%s3] sm:$0xff]
  %v257 = vld [vmem:[%s3 + $0x8] sm:$0xff]
  %v258 = vld [vmem:[%s3 + $0x10] sm:$0xff]
  %v259 = vld [vmem:[%s3 + $0x18] sm:$0xff]
  %261 = vset.pattern.permute.xlu0 0
  %262 = vperm.xlu0 %261, %v256
  %v263 = vpop.permute.xlu0 %262
  %266 = vset.pattern.permute.xlu0 0
  %267 = vperm.xlu0 %266, %v257
  %v268 = vpop.permute.xlu0 %267
  %271 = vset.pattern.permute.xlu0 0
  %272 = vperm.xlu0 %271, %v258
  %v273 = vpop.permute.xlu0 %272
  %276 = vset.pattern.permute.xlu0 0
  %277 = vperm.xlu0 %276, %v259
  %v278 = vpop.permute.xlu0 %277
  %v280 = vld [vmem:[%s4] sm:$0xff]
  %v281 = vld [vmem:[%s4 + $0x8] sm:$0xff]
  %v282 = vld [vmem:[%s4 + $0x10] sm:$0xff]
  %v283 = vld [vmem:[%s4 + $0x18] sm:$0xff]
  %v284 = vld [vmem:[%s4 + $0x20] sm:$0xff]
  %v285 = vld [vmem:[%s4 + $0x28] sm:$0xff]
  %v286 = vld [vmem:[%s4 + $0x30] sm:$0xff]
  %v287 = vld [vmem:[%s4 + $0x38] sm:$0xff]
  %v288 = vld [vmem:[%s5] sm:$0xff]
  %v289 = vld [vmem:[%s5 + $0x8] sm:$0xff]
  %v290 = vld [vmem:[%s5 + $0x10] sm:$0xff]
  %v291 = vld [vmem:[%s5 + $0x18] sm:$0xff]
  %v292 = vld [vmem:[%s5 + $0x20] sm:$0xff]
  %v293 = vld [vmem:[%s5 + $0x28] sm:$0xff]
  %v294 = vld [vmem:[%s5 + $0x30] sm:$0xff]
  %v295 = vld [vmem:[%s5 + $0x38] sm:$0xff]
  %v296 = vld [vmem:[%s6] sm:$0xff]
  %v297 = vld [vmem:[%s6 + $0x8] sm:$0xff]
  %v298 = vld [vmem:[%s6 + $0x10] sm:$0xff]
  %v299 = vld [vmem:[%s6 + $0x18] sm:$0xff]
  %v300 = vld [vmem:[%s6 + $0x20] sm:$0xff]
  %v301 = vld [vmem:[%s6 + $0x28] sm:$0xff]
  %v302 = vld [vmem:[%s6 + $0x30] sm:$0xff]
  %v303 = vld [vmem:[%s6 + $0x38] sm:$0xff]
  %v304 = vld [vmem:[#allocation2] sm:$0xff]
  %v305 = vld [vmem:[#allocation2 + $0x8] sm:$0xff]
  %v306 = vld [vmem:[#allocation2 + $0x10] sm:$0xff]
  %v307 = vld [vmem:[#allocation2 + $0x18] sm:$0xff]
  %v308 = vld [vmem:[#allocation2 + $0x20] sm:$0xff]
  %v309 = vld [vmem:[#allocation2 + $0x28] sm:$0xff]
  %v310 = vld [vmem:[#allocation2 + $0x30] sm:$0xff]
  %v311 = vld [vmem:[#allocation2 + $0x38] sm:$0xff]
  %vm312 = vcmask 523264
  %v314 = vsel %vm312, %v252, 0
  %v317 = vsel %vm312, %v253, 0
  %v320 = vsel %vm312, %v254, 0
  %v323 = vsel %vm312, %v255, 0
  %325 = vmatprep.subr.mxu0 0.0
  %326 = vmatpush1.msra.mxu0 0.0
  %327 = vmatprep.subr.mxu0 0.0
  %328 = vmatpush1.msra.mxu0 0.0
  %329 = vmatprep.subr.mxu0 0.0
  %330 = vmatpush1.msra.mxu0 0.0
  %331 = vmatprep.subr.mxu0 0.0
  %332 = vmatpush1.msra.mxu0 0.0
  %333 = vmatprep.subr.mxu0 0.0
  %334 = vmatpush1.msra.mxu0 0.0
  %335 = vmatprep.subr.mxu0 0.0
  %336 = vmatpush1.msra.mxu0 0.0
  %337 = vmatprep.subr.mxu0 0.0
  %338 = vmatpush1.msra.mxu0 0.0
  %339 = vmatprep.subr.mxu0 0.0
  %340 = vmatpush1.msra.mxu0 0.0
  %341 = vmatprep.subr.mxu0 0.0
  %342 = vmatpush1.msra.mxu0 %v311
  %343 = vmatprep.subr.mxu0 0.0
  %344 = vmatpush1.msra.mxu0 %v310
  %345 = vmatprep.subr.mxu0 0.0
  %346 = vmatpush1.msra.mxu0 %v309
  %347 = vmatprep.subr.mxu0 0.0
  %348 = vmatpush1.msra.mxu0 %v308
  %349 = vmatprep.subr.mxu0 0.0
  %350 = vmatpush1.msra.mxu0 %v307
  %351 = vmatprep.subr.mxu0 0.0
  %352 = vmatpush1.msra.mxu0 %v306
  %353 = vmatprep.subr.mxu0 0.0
  %354 = vmatpush1.msra.mxu0 %v305
  %355 = vmatprep.subr.mxu0 0.0
  %356 = vmatpush1.msra.mxu0 %v304
  %357 = vmatprep.subr.mxu0 0.0
  %358 = vmatpush2.msra.mxu0 0.0
  %359 = vmatprep.subr.mxu0 0.0
  %360 = vmatpush2.msra.mxu0 0.0
  %361 = vmatprep.subr.mxu0 0.0
  %362 = vmatpush2.msra.mxu0 0.0
  %363 = vmatprep.subr.mxu0 0.0
  %364 = vmatpush2.msra.mxu0 0.0
  %365 = vmatprep.subr.mxu0 0.0
  %366 = vmatpush2.msra.mxu0 0.0
  %367 = vmatprep.subr.mxu0 0.0
  %368 = vmatpush2.msra.mxu0 0.0
  %369 = vmatprep.subr.mxu0 0.0
  %370 = vmatpush2.msra.mxu0 0.0
  %371 = vmatprep.subr.mxu0 0.0
  %372 = vmatpush2.msra.mxu0 0.0
  %373 = vmatprep.subr.mxu0 0.0
  %374 = vmatpush2.msra.mxu0 0.0
  %375 = vmatprep.subr.mxu0 0.0
  %376 = vmatpush2.msra.mxu0 0.0
  %377 = vmatprep.subr.mxu0 0.0
  %378 = vmatpush2.msra.mxu0 0.0
  %379 = vmatprep.subr.mxu0 0.0
  %380 = vmatpush2.msra.mxu0 0.0
  %381 = vmatprep.subr.mxu0 0.0
  %382 = vmatpush2.msra.mxu0 0.0
  %383 = vmatprep.subr.mxu0 0.0
  %384 = vmatpush2.msra.mxu0 0.0
  %385 = vmatprep.subr.mxu0 0.0
  %386 = vmatpush2.msra.mxu0 0.0
  %387 = vmatprep.subr.mxu0 0.0
  %388 = vmatpush2.msra.mxu0 0.0
  %389 = vmatprep.mubr.f32.mxu0 0.0
  %390 = vmatmul.mubr.f32.gmra.mxu0 %v314
  %v391 = vpop.f32.mrf.mxu0
  %v392 = vadd.f32 %v263, %v391
  %v393 = vpop.f32.mrf.mxu0
  %394 = vmatprep.mubr.f32.mxu0 0.0
  %395 = vmatmul.mubr.f32.gmra.mxu0 %v317
  %v396 = vpop.f32.mrf.mxu0
  %v397 = vadd.f32 %v268, %v396
  %v398 = vpop.f32.mrf.mxu0
  %399 = vmatprep.mubr.f32.mxu0 0.0
  %400 = vmatmul.mubr.f32.gmra.mxu0 %v320
  %v401 = vpop.f32.mrf.mxu0
  %v402 = vadd.f32 %v273, %v401
  %v403 = vpop.f32.mrf.mxu0
  %404 = vmatprep.mubr.f32.mxu0 0.0
  %405 = vmatmul.mubr.f32.gmra.mxu0 %v323
  %v406 = vpop.f32.mrf.mxu0
  %v407 = vadd.f32 %v278, %v406
  %v408 = vpop.f32.mrf.mxu0
  %409 = vdwg.mxu0
  %v410 = vxor.u32 %v392, 2147483648
  %v411 = vxor.u32 %v397, 2147483648
  %v412 = vxor.u32 %v402, 2147483648
  %v413 = vxor.u32 %v407, 2147483648
  %v414 = vmul.f32 %v410, 1.442695
  %v415 = vpow.pop %v414
  %v416 = vmul.f32 %v411, 1.442695
  %v417 = vpow.pop %v416
  %v418 = vmul.f32 %v412, 1.442695
  %v419 = vpow.pop %v418
  %v420 = vmul.f32 %v413, 1.442695
  %v421 = vpow.pop %v420
  %v422 = vadd.f32 %v415, 1.0
  %v423 = vadd.f32 %v417, 1.0
  %v424 = vadd.f32 %v419, 1.0
  %v425 = vadd.f32 %v421, 1.0
  %v426 = vrcp.pop %v422
  %v427 = vmul.f32 1.0, %v426
  %v428 = vrcp.pop %v423
  %v429 = vmul.f32 1.0, %v428
  %v430 = vrcp.pop %v424
  %v431 = vmul.f32 1.0, %v430
  %v432 = vrcp.pop %v425
  %v433 = vmul.f32 1.0, %v432
  %vm434 = vcmask 130048
  %v436 = vsel %vm434, %v427, 0
  %v439 = vsel %vm434, %v429, 0
  %441 = vmatprep.subr.mxu0 0.0
  %442 = vmatpush1.msra.mxu0 0.0
  %443 = vmatprep.subr.mxu0 0.0
  %444 = vmatpush1.msra.mxu0 0.0
  %445 = vmatprep.subr.mxu0 0.0
  %446 = vmatpush1.msra.mxu0 0.0
  %447 = vmatprep.subr.mxu0 0.0
  %448 = vmatpush1.msra.mxu0 0.0
  %449 = vmatprep.subr.mxu0 0.0
  %450 = vmatpush1.msra.mxu0 0.0
  %451 = vmatprep.subr.mxu0 0.0
  %452 = vmatpush1.msra.mxu0 0.0
  %453 = vmatprep.subr.mxu0 0.0
  %454 = vmatpush1.msra.mxu0 0.0
  %455 = vmatprep.subr.mxu0 0.0
  %456 = vmatpush1.msra.mxu0 0.0
  %457 = vmatprep.subr.mxu0 0.0
  %458 = vmatpush1.msra.mxu0 0.0
  %459 = vmatprep.subr.mxu0 0.0
  %460 = vmatpush1.msra.mxu0 0.0
  %461 = vmatprep.subr.mxu0 0.0
  %462 = vmatpush1.msra.mxu0 0.0
  %463 = vmatprep.subr.mxu0 0.0
  %464 = vmatpush1.msra.mxu0 0.0
  %465 = vmatprep.subr.mxu0 0.0
  %466 = vmatpush1.msra.mxu0 0.0
  %467 = vmatprep.subr.mxu0 0.0
  %468 = vmatpush1.msra.mxu0 0.0
  %469 = vmatprep.subr.mxu0 %v283
  %470 = vmatpush1.msra.mxu0 %v282
  %471 = vmatprep.subr.mxu0 %v281
  %472 = vmatpush1.msra.mxu0 %v280
  %473 = vmatprep.subr.mxu0 0.0
  %474 = vmatpush2.msra.mxu0 0.0
  %475 = vmatprep.subr.mxu0 0.0
  %476 = vmatpush2.msra.mxu0 0.0
  %477 = vmatprep.subr.mxu0 0.0
  %478 = vmatpush2.msra.mxu0 0.0
  %479 = vmatprep.subr.mxu0 0.0
  %480 = vmatpush2.msra.mxu0 0.0
  %481 = vmatprep.subr.mxu0 0.0
  %482 = vmatpush2.msra.mxu0 0.0
  %483 = vmatprep.subr.mxu0 0.0
  %484 = vmatpush2.msra.mxu0 0.0
  %485 = vmatprep.subr.mxu0 0.0
  %486 = vmatpush2.msra.mxu0 0.0
  %487 = vmatprep.subr.mxu0 0.0
  %488 = vmatpush2.msra.mxu0 0.0
  %489 = vmatprep.subr.mxu0 0.0
  %490 = vmatpush2.msra.mxu0 0.0
  %491 = vmatprep.subr.mxu0 0.0
  %492 = vmatpush2.msra.mxu0 0.0
  %493 = vmatprep.subr.mxu0 0.0
  %494 = vmatpush2.msra.mxu0 0.0
  %495 = vmatprep.subr.mxu0 0.0
  %496 = vmatpush2.msra.mxu0 0.0
  %497 = vmatprep.subr.mxu0 0.0
  %498 = vmatpush2.msra.mxu0 0.0
  %499 = vmatprep.subr.mxu0 0.0
  %500 = vmatpush2.msra.mxu0 0.0
  %501 = vmatprep.subr.mxu0 0.0
  %502 = vmatpush2.msra.mxu0 0.0
  %503 = vmatprep.subr.mxu0 0.0
  %504 = vmatpush2.msra.mxu0 0.0
  %505 = vmatprep.mubr.f32.mxu0 0.0
  %506 = vmatmul.mubr.f32.gmra.mxu0 %v436
  %v507 = vpop.f32.mrf.mxu0
  %v508 = vadd.f32 0.0, %v507
  %v509 = vpop.f32.mrf.mxu0
  %v510 = vadd.f32 0.0, %v509
  %511 = vmatprep.mubr.f32.mxu0 0.0
  %512 = vmatmul.mubr.f32.gmra.mxu0 %v439
  %v513 = vpop.f32.mrf.mxu0
  %v514 = vadd.f32 0.0, %v513
  %v515 = vpop.f32.mrf.mxu0
  %v516 = vadd.f32 0.0, %v515
  %517 = vdwg.mxu0
  %520 = vrot.lane.b32.xlu0 %v431, 112
  %v521 = vpop.permute.xlu0 %520
  %522 = vrot.lane.b32.xlu0 %v433, 112
  %v523 = vpop.permute.xlu0 %522
  %v524 = vsel %vm434, %v521, 0
  %v526 = vsel %vm434, %v523, 0
  %528 = vmatprep.subr.mxu0 0.0
  %529 = vmatpush1.msra.mxu0 0.0
  %530 = vmatprep.subr.mxu0 0.0
  %531 = vmatpush1.msra.mxu0 0.0
  %532 = vmatprep.subr.mxu0 0.0
  %533 = vmatpush1.msra.mxu0 0.0
  %534 = vmatprep.subr.mxu0 0.0
  %535 = vmatpush1.msra.mxu0 0.0
  %536 = vmatprep.subr.mxu0 0.0
  %537 = vmatpush1.msra.mxu0 0.0
  %538 = vmatprep.subr.mxu0 0.0
  %539 = vmatpush1.msra.mxu0 0.0
  %540 = vmatprep.subr.mxu0 0.0
  %541 = vmatpush1.msra.mxu0 0.0
  %542 = vmatprep.subr.mxu0 0.0
  %543 = vmatpush1.msra.mxu0 0.0
  %544 = vmatprep.subr.mxu0 0.0
  %545 = vmatpush1.msra.mxu0 0.0
  %546 = vmatprep.subr.mxu0 0.0
  %547 = vmatpush1.msra.mxu0 0.0
  %548 = vmatprep.subr.mxu0 0.0
  %549 = vmatpush1.msra.mxu0 0.0
  %550 = vmatprep.subr.mxu0 0.0
  %551 = vmatpush1.msra.mxu0 0.0
  %552 = vmatprep.subr.mxu0 0.0
  %553 = vmatpush1.msra.mxu0 0.0
  %554 = vmatprep.subr.mxu0 0.0
  %555 = vmatpush1.msra.mxu0 0.0
  %556 = vmatprep.subr.mxu0 %v287
  %557 = vmatpush1.msra.mxu0 %v286
  %558 = vmatprep.subr.mxu0 %v285
  %559 = vmatpush1.msra.mxu0 %v284
  %560 = vmatprep.subr.mxu0 0.0
  %561 = vmatpush2.msra.mxu0 0.0
  %562 = vmatprep.subr.mxu0 0.0
  %563 = vmatpush2.msra.mxu0 0.0
  %564 = vmatprep.subr.mxu0 0.0
  %565 = vmatpush2.msra.mxu0 0.0
  %566 = vmatprep.subr.mxu0 0.0
  %567 = vmatpush2.msra.mxu0 0.0
  %568 = vmatprep.subr.mxu0 0.0
  %569 = vmatpush2.msra.mxu0 0.0
  %570 = vmatprep.subr.mxu0 0.0
  %571 = vmatpush2.msra.mxu0 0.0
  %572 = vmatprep.subr.mxu0 0.0
  %573 = vmatpush2.msra.mxu0 0.0
  %574 = vmatprep.subr.mxu0 0.0
  %575 = vmatpush2.msra.mxu0 0.0
  %576 = vmatprep.subr.mxu0 0.0
  %577 = vmatpush2.msra.mxu0 0.0
  %578 = vmatprep.subr.mxu0 0.0
  %579 = vmatpush2.msra.mxu0 0.0
  %580 = vmatprep.subr.mxu0 0.0
  %581 = vmatpush2.msra.mxu0 0.0
  %582 = vmatprep.subr.mxu0 0.0
  %583 = vmatpush2.msra.mxu0 0.0
  %584 = vmatprep.subr.mxu0 0.0
  %585 = vmatpush2.msra.mxu0 0.0
  %586 = vmatprep.subr.mxu0 0.0
  %587 = vmatpush2.msra.mxu0 0.0
  %588 = vmatprep.subr.mxu0 0.0
  %589 = vmatpush2.msra.mxu0 0.0
  %590 = vmatprep.subr.mxu0 0.0
  %591 = vmatpush2.msra.mxu0 0.0
  %592 = vmatprep.mubr.f32.mxu0 0.0
  %593 = vmatmul.mubr.f32.gmra.mxu0 %v524
  %v594 = vpop.f32.mrf.mxu0
  %v595 = vadd.f32 0.0, %v594
  %v596 = vpop.f32.mrf.mxu0
  %v597 = vadd.f32 0.0, %v596
  %598 = vmatprep.mubr.f32.mxu0 0.0
  %599 = vmatmul.mubr.f32.gmra.mxu0 %v526
  %v600 = vpop.f32.mrf.mxu0
  %v601 = vadd.f32 0.0, %v600
  %v602 = vpop.f32.mrf.mxu0
  %v603 = vadd.f32 0.0, %v602
  %604 = vdwg.mxu0
  %v605 = vmul.f32 %v508, %v595
  %v606 = vmul.f32 %v510, %v597
  %v607 = vmul.f32 %v514, %v601
  %v608 = vmul.f32 %v516, %v603
  %610 = vset.pattern.permute.xlu0 0
  %611 = vperm.xlu0 %610, %v296
  %v612 = vpop.permute.xlu0 %611
  %615 = vset.pattern.permute.xlu0 0
  %616 = vperm.xlu0 %615, %v297
  %v617 = vpop.permute.xlu0 %616
  %620 = vset.pattern.permute.xlu0 0
  %621 = vperm.xlu0 %620, %v298
  %v622 = vpop.permute.xlu0 %621
  %625 = vset.pattern.permute.xlu0 0
  %626 = vperm.xlu0 %625, %v299
  %v627 = vpop.permute.xlu0 %626
  %630 = vset.pattern.permute.xlu0 0
  %631 = vperm.xlu0 %630, %v300
  %v632 = vpop.permute.xlu0 %631
  %635 = vset.pattern.permute.xlu0 0
  %636 = vperm.xlu0 %635, %v301
  %v637 = vpop.permute.xlu0 %636
  %640 = vset.pattern.permute.xlu0 0
  %641 = vperm.xlu0 %640, %v302
  %v642 = vpop.permute.xlu0 %641
  %645 = vset.pattern.permute.xlu0 0
  %646 = vperm.xlu0 %645, %v303
  %v647 = vpop.permute.xlu0 %646
  %v650 = vsel %vm434, %v288, 0
  %v653 = vsel %vm434, %v289, 0
  %v656 = vsel %vm434, %v290, 0
  %v659 = vsel %vm434, %v291, 0
  %v662 = vsel %vm434, %v292, 0
  %v665 = vsel %vm434, %v293, 0
  %v668 = vsel %vm434, %v294, 0
  %v671 = vsel %vm434, %v295, 0
  %673 = vmatprep.subr.mxu0 0.0
  %674 = vmatpush1.msra.mxu0 0.0
  %675 = vmatprep.subr.mxu0 0.0
  %676 = vmatpush1.msra.mxu0 0.0
  %677 = vmatprep.subr.mxu0 0.0
  %678 = vmatpush1.msra.mxu0 0.0
  %679 = vmatprep.subr.mxu0 0.0
  %680 = vmatpush1.msra.mxu0 0.0
  %681 = vmatprep.subr.mxu0 0.0
  %682 = vmatpush1.msra.mxu0 0.0
  %683 = vmatprep.subr.mxu0 0.0
  %684 = vmatpush1.msra.mxu0 0.0
  %685 = vmatprep.subr.mxu0 0.0
  %686 = vmatpush1.msra.mxu0 0.0
  %687 = vmatprep.subr.mxu0 0.0
  %688 = vmatpush1.msra.mxu0 0.0
  %689 = vmatprep.subr.mxu0 0.0
  %690 = vmatpush1.msra.mxu0 0.0
  %691 = vmatprep.subr.mxu0 0.0
  %692 = vmatpush1.msra.mxu0 0.0
  %693 = vmatprep.subr.mxu0 0.0
  %694 = vmatpush1.msra.mxu0 0.0
  %695 = vmatprep.subr.mxu0 0.0
  %696 = vmatpush1.msra.mxu0 0.0
  %697 = vmatprep.subr.mxu0 0.0
  %698 = vmatpush1.msra.mxu0 0.0
  %699 = vmatprep.subr.mxu0 0.0
  %700 = vmatpush1.msra.mxu0 0.0
  %701 = vmatprep.subr.mxu0 %v608
  %702 = vmatpush1.msra.mxu0 %v607
  %703 = vmatprep.subr.mxu0 %v606
  %704 = vmatpush1.msra.mxu0 %v605
  %705 = vmatprep.subr.mxu0 0.0
  %706 = vmatpush2.msra.mxu0 0.0
  %707 = vmatprep.subr.mxu0 0.0
  %708 = vmatpush2.msra.mxu0 0.0
  %709 = vmatprep.subr.mxu0 0.0
  %710 = vmatpush2.msra.mxu0 0.0
  %711 = vmatprep.subr.mxu0 0.0
  %712 = vmatpush2.msra.mxu0 0.0
  %713 = vmatprep.subr.mxu0 0.0
  %714 = vmatpush2.msra.mxu0 0.0
  %715 = vmatprep.subr.mxu0 0.0
  %716 = vmatpush2.msra.mxu0 0.0
  %717 = vmatprep.subr.mxu0 0.0
  %718 = vmatpush2.msra.mxu0 0.0
  %719 = vmatprep.subr.mxu0 0.0
  %720 = vmatpush2.msra.mxu0 0.0
  %721 = vmatprep.subr.mxu0 0.0
  %722 = vmatpush2.msra.mxu0 0.0
  %723 = vmatprep.subr.mxu0 0.0
  %724 = vmatpush2.msra.mxu0 0.0
  %725 = vmatprep.subr.mxu0 0.0
  %726 = vmatpush2.msra.mxu0 0.0
  %727 = vmatprep.subr.mxu0 0.0
  %728 = vmatpush2.msra.mxu0 0.0
  %729 = vmatprep.subr.mxu0 0.0
  %730 = vmatpush2.msra.mxu0 0.0
  %731 = vmatprep.subr.mxu0 0.0
  %732 = vmatpush2.msra.mxu0 0.0
  %733 = vmatprep.subr.mxu0 0.0
  %734 = vmatpush2.msra.mxu0 0.0
  %735 = vmatprep.subr.mxu0 0.0
  %736 = vmatpush2.msra.mxu0 0.0
  %737 = vmatprep.mubr.f32.mxu0 0.0
  %738 = vmatmul.mubr.f32.gmra.mxu0 %v650
  %v739 = vpop.f32.mrf.mxu0
  %v740 = vadd.f32 %v612, %v739
  %v741 = vpop.f32.mrf.mxu0
  %v742 = vadd.f32 %v612, %v741
  %743 = vmatprep.mubr.f32.mxu0 0.0
  %744 = vmatmul.mubr.f32.gmra.mxu0 %v653
  %v745 = vpop.f32.mrf.mxu0
  %v746 = vadd.f32 %v617, %v745
  %v747 = vpop.f32.mrf.mxu0
  %v748 = vadd.f32 %v617, %v747
  %749 = vmatprep.mubr.f32.mxu0 0.0
  %750 = vmatmul.mubr.f32.gmra.mxu0 %v656
  %v751 = vpop.f32.mrf.mxu0
  %v752 = vadd.f32 %v622, %v751
  %v753 = vpop.f32.mrf.mxu0
  %v754 = vadd.f32 %v622, %v753
  %755 = vmatprep.mubr.f32.mxu0 0.0
  %756 = vmatmul.mubr.f32.gmra.mxu0 %v659
  %v757 = vpop.f32.mrf.mxu0
  %v758 = vadd.f32 %v627, %v757
  %v759 = vpop.f32.mrf.mxu0
  %v760 = vadd.f32 %v627, %v759
  %761 = vmatprep.mubr.f32.mxu0 0.0
  %762 = vmatmul.mubr.f32.gmra.mxu0 %v662
  %v763 = vpop.f32.mrf.mxu0
  %v764 = vadd.f32 %v632, %v763
  %v765 = vpop.f32.mrf.mxu0
  %v766 = vadd.f32 %v632, %v765
  %767 = vmatprep.mubr.f32.mxu0 0.0
  %768 = vmatmul.mubr.f32.gmra.mxu0 %v665
  %v769 = vpop.f32.mrf.mxu0
  %v770 = vadd.f32 %v637, %v769
  %v771 = vpop.f32.mrf.mxu0
  %v772 = vadd.f32 %v637, %v771
  %773 = vmatprep.mubr.f32.mxu0 0.0
  %774 = vmatmul.mubr.f32.gmra.mxu0 %v668
  %v775 = vpop.f32.mrf.mxu0
  %v776 = vadd.f32 %v642, %v775
  %v777 = vpop.f32.mrf.mxu0
  %v778 = vadd.f32 %v642, %v777
  %779 = vmatprep.mubr.f32.mxu0 0.0
  %780 = vmatmul.mubr.f32.gmra.mxu0 %v671
  %v781 = vpop.f32.mrf.mxu0
  %v782 = vadd.f32 %v647, %v781
  %v783 = vpop.f32.mrf.mxu0
  %v784 = vadd.f32 %v647, %v783
  %785 = vdwg.mxu0
  %v786 = vadd.f32 %v740, 3.0
  %v787 = vadd.f32 %v742, 3.0
  %v788 = vadd.f32 %v746, 3.0
  %v789 = vadd.f32 %v748, 3.0
  %v790 = vadd.f32 %v752, 3.0
  %v791 = vadd.f32 %v754, 3.0
  %v792 = vadd.f32 %v758, 3.0
  %v793 = vadd.f32 %v760, 3.0
  %v794 = vadd.f32 %v764, 3.0
  %v795 = vadd.f32 %v766, 3.0
  %v796 = vadd.f32 %v770, 3.0
  %v797 = vadd.f32 %v772, 3.0
  %v798 = vadd.f32 %v776, 3.0
  %v799 = vadd.f32 %v778, 3.0
  %v800 = vadd.f32 %v782, 3.0
  %v801 = vadd.f32 %v784, 3.0
  %v802 = vmax.f32 %v786, 0.0
  %v803 = vmax.f32 %v787, 0.0
  %v804 = vmax.f32 %v788, 0.0
  %v805 = vmax.f32 %v789, 0.0
  %v806 = vmax.f32 %v790, 0.0
  %v807 = vmax.f32 %v791, 0.0
  %v808 = vmax.f32 %v792, 0.0
  %v809 = vmax.f32 %v793, 0.0
  %v810 = vmax.f32 %v794, 0.0
  %v811 = vmax.f32 %v795, 0.0
  %v812 = vmax.f32 %v796, 0.0
  %v813 = vmax.f32 %v797, 0.0
  %v814 = vmax.f32 %v798, 0.0
  %v815 = vmax.f32 %v799, 0.0
  %v816 = vmax.f32 %v800, 0.0
  %v817 = vmax.f32 %v801, 0.0
  %v818 = vmin.f32 %v802, 6.0
  %v819 = vmin.f32 %v803, 6.0
  %v820 = vmin.f32 %v804, 6.0
  %v821 = vmin.f32 %v805, 6.0
  %v822 = vmin.f32 %v806, 6.0
  %v823 = vmin.f32 %v807, 6.0
  %v824 = vmin.f32 %v808, 6.0
  %v825 = vmin.f32 %v809, 6.0
  %v826 = vmin.f32 %v810, 6.0
  %v827 = vmin.f32 %v811, 6.0
  %v828 = vmin.f32 %v812, 6.0
  %v829 = vmin.f32 %v813, 6.0
  %v830 = vmin.f32 %v814, 6.0
  %v831 = vmin.f32 %v815, 6.0
  %v832 = vmin.f32 %v816, 6.0
  %v833 = vmin.f32 %v817, 6.0
  %v834 = vmul.f32 %v818, 0.16666667
  %v835 = vmul.f32 %v819, 0.16666667
  %v836 = vmul.f32 %v820, 0.16666667
  %v837 = vmul.f32 %v821, 0.16666667
  %v838 = vmul.f32 %v822, 0.16666667
  %v839 = vmul.f32 %v823, 0.16666667
  %v840 = vmul.f32 %v824, 0.16666667
  %v841 = vmul.f32 %v825, 0.16666667
  %v842 = vmul.f32 %v826, 0.16666667
  %v843 = vmul.f32 %v827, 0.16666667
  %v844 = vmul.f32 %v828, 0.16666667
  %v845 = vmul.f32 %v829, 0.16666667
  %v846 = vmul.f32 %v830, 0.16666667
  %v847 = vmul.f32 %v831, 0.16666667
  %v848 = vmul.f32 %v832, 0.16666667
  %v849 = vmul.f32 %v833, 0.16666667
  %v850 = vmul.f32 %v740, %v834
  %v851 = vmul.f32 %v742, %v835
  %v852 = vmul.f32 %v746, %v836
  %v853 = vmul.f32 %v748, %v837
  %v854 = vmul.f32 %v752, %v838
  %v855 = vmul.f32 %v754, %v839
  %v856 = vmul.f32 %v758, %v840
  %v857 = vmul.f32 %v760, %v841
  %v858 = vmul.f32 %v764, %v842
  %v859 = vmul.f32 %v766, %v843
  %v860 = vmul.f32 %v770, %v844
  %v861 = vmul.f32 %v772, %v845
  %v862 = vmul.f32 %v776, %v846
  %v863 = vmul.f32 %v778, %v847
  %v864 = vmul.f32 %v782, %v848
  %v865 = vmul.f32 %v784, %v849
  %866 = vst [vmem:[%s7] sm:$0xff] %v850
  %867 = vst [vmem:[%s7 + $0x8] sm:$0xff] %v851
  %868 = vst [vmem:[%s7 + $0x10] sm:$0xff] %v852
  %869 = vst [vmem:[%s7 + $0x18] sm:$0xff] %v853
  %870 = vst [vmem:[%s7 + $0x20] sm:$0xff] %v854
  %871 = vst [vmem:[%s7 + $0x28] sm:$0xff] %v855
  %872 = vst [vmem:[%s7 + $0x30] sm:$0xff] %v856
  %873 = vst [vmem:[%s7 + $0x38] sm:$0xff] %v857
  %874 = vst [vmem:[%s7 + $0x40] sm:$0xff] %v858
  %875 = vst [vmem:[%s7 + $0x48] sm:$0xff] %v859
  %876 = vst [vmem:[%s7 + $0x50] sm:$0xff] %v860
  %877 = vst [vmem:[%s7 + $0x58] sm:$0xff] %v861
  %878 = vst [vmem:[%s7 + $0x60] sm:$0xff] %v862
  %879 = vst [vmem:[%s7 + $0x68] sm:$0xff] %v863
  %880 = vst [vmem:[%s7 + $0x70] sm:$0xff] %v864
  %881 = vst [vmem:[%s7 + $0x78] sm:$0xff] %v865
  %s882 = scalar_lea.vmem [#allocation2], 64
  %v883 = vld [vmem:[%s882] sm:$0xff]
  %v884 = vld [vmem:[%s882 + $0x8] sm:$0xff]
  %v885 = vld [vmem:[%s882 + $0x10] sm:$0xff]
  %v886 = vld [vmem:[%s882 + $0x18] sm:$0xff]
  %v887 = vld [vmem:[%s882 + $0x20] sm:$0xff]
  %v888 = vld [vmem:[%s882 + $0x28] sm:$0xff]
  %v889 = vld [vmem:[%s882 + $0x30] sm:$0xff]
  %v890 = vld [vmem:[%s882 + $0x38] sm:$0xff]
  %891 = vmatprep.subr.mxu0 0.0
  %892 = vmatpush1.msra.mxu0 0.0
  %893 = vmatprep.subr.mxu0 0.0
  %894 = vmatpush1.msra.mxu0 0.0
  %895 = vmatprep.subr.mxu0 0.0
  %896 = vmatpush1.msra.mxu0 0.0
  %897 = vmatprep.subr.mxu0 0.0
  %898 = vmatpush1.msra.mxu0 0.0
  %899 = vmatprep.subr.mxu0 0.0
  %900 = vmatpush1.msra.mxu0 0.0
  %901 = vmatprep.subr.mxu0 0.0
  %902 = vmatpush1.msra.mxu0 0.0
  %903 = vmatprep.subr.mxu0 0.0
  %904 = vmatpush1.msra.mxu0 0.0
  %905 = vmatprep.subr.mxu0 0.0
  %906 = vmatpush1.msra.mxu0 0.0
  %907 = vmatprep.subr.mxu0 0.0
  %908 = vmatpush1.msra.mxu0 %v890
  %909 = vmatprep.subr.mxu0 0.0
  %910 = vmatpush1.msra.mxu0 %v889
  %911 = vmatprep.subr.mxu0 0.0
  %912 = vmatpush1.msra.mxu0 %v888
  %913 = vmatprep.subr.mxu0 0.0
  %914 = vmatpush1.msra.mxu0 %v887
  %915 = vmatprep.subr.mxu0 0.0
  %916 = vmatpush1.msra.mxu0 %v886
  %917 = vmatprep.subr.mxu0 0.0
  %918 = vmatpush1.msra.mxu0 %v885
  %919 = vmatprep.subr.mxu0 0.0
  %920 = vmatpush1.msra.mxu0 %v884
  %921 = vmatprep.subr.mxu0 0.0
  %922 = vmatpush1.msra.mxu0 %v883
  %923 = vmatprep.subr.mxu0 0.0
  %924 = vmatpush2.msra.mxu0 0.0
  %925 = vmatprep.subr.mxu0 0.0
  %926 = vmatpush2.msra.mxu0 0.0
  %927 = vmatprep.subr.mxu0 0.0
  %928 = vmatpush2.msra.mxu0 0.0
  %929 = vmatprep.subr.mxu0 0.0
  %930 = vmatpush2.msra.mxu0 0.0
  %931 = vmatprep.subr.mxu0 0.0
  %932 = vmatpush2.msra.mxu0 0.0
  %933 = vmatprep.subr.mxu0 0.0
  %934 = vmatpush2.msra.mxu0 0.0
  %935 = vmatprep.subr.mxu0 0.0
  %936 = vmatpush2.msra.mxu0 0.0
  %937 = vmatprep.subr.mxu0 0.0
  %938 = vmatpush2.msra.mxu0 0.0
  %939 = vmatprep.subr.mxu0 0.0
  %940 = vmatpush2.msra.mxu0 0.0
  %941 = vmatprep.subr.mxu0 0.0
  %942 = vmatpush2.msra.mxu0 0.0
  %943 = vmatprep.subr.mxu0 0.0
  %944 = vmatpush2.msra.mxu0 0.0
  %945 = vmatprep.subr.mxu0 0.0
  %946 = vmatpush2.msra.mxu0 0.0
  %947 = vmatprep.subr.mxu0 0.0
  %948 = vmatpush2.msra.mxu0 0.0
  %949 = vmatprep.subr.mxu0 0.0
  %950 = vmatpush2.msra.mxu0 0.0
  %951 = vmatprep.subr.mxu0 0.0
  %952 = vmatpush2.msra.mxu0 0.0
  %953 = vmatprep.subr.mxu0 0.0
  %954 = vmatpush2.msra.mxu0 0.0
  %955 = vmatprep.mubr.f32.mxu0 0.0
  %956 = vmatmul.mubr.f32.gmra.mxu0 %v314
  %v957 = vpop.f32.mrf.mxu0
  %v958 = vadd.f32 %v263, %v957
  %v959 = vpop.f32.mrf.mxu0
  %960 = vmatprep.mubr.f32.mxu0 0.0
  %961 = vmatmul.mubr.f32.gmra.mxu0 %v317
  %v962 = vpop.f32.mrf.mxu0
  %v963 = vadd.f32 %v268, %v962
  %v964 = vpop.f32.mrf.mxu0
  %965 = vmatprep.mubr.f32.mxu0 0.0
  %966 = vmatmul.mubr.f32.gmra.mxu0 %v320
  %v967 = vpop.f32.mrf.mxu0
  %v968 = vadd.f32 %v273, %v967
  %v969 = vpop.f32.mrf.mxu0
  %970 = vmatprep.mubr.f32.mxu0 0.0
  %971 = vmatmul.mubr.f32.gmra.mxu0 %v323
  %v972 = vpop.f32.mrf.mxu0
  %v973 = vadd.f32 %v278, %v972
  %v974 = vpop.f32.mrf.mxu0
  %975 = vdwg.mxu0
  %v976 = vxor.u32 %v958, 2147483648
  %v977 = vxor.u32 %v963, 2147483648
  %v978 = vxor.u32 %v968, 2147483648
  %v979 = vxor.u32 %v973, 2147483648
  %v980 = vmul.f32 %v976, 1.442695
  %v981 = vpow.pop %v980
  %v982 = vmul.f32 %v977, 1.442695
  %v983 = vpow.pop %v982
  %v984 = vmul.f32 %v978, 1.442695
  %v985 = vpow.pop %v984
  %v986 = vmul.f32 %v979, 1.442695
  %v987 = vpow.pop %v986
  %v988 = vadd.f32 %v981, 1.0
  %v989 = vadd.f32 %v983, 1.0
  %v990 = vadd.f32 %v985, 1.0
  %v991 = vadd.f32 %v987, 1.0
  %v992 = vrcp.pop %v988
  %v993 = vmul.f32 1.0, %v992
  %v994 = vrcp.pop %v989
  %v995 = vmul.f32 1.0, %v994
  %v996 = vrcp.pop %v990
  %v997 = vmul.f32 1.0, %v996
  %v998 = vrcp.pop %v991
  %v999 = vmul.f32 1.0, %v998
  %v1001 = vsel %vm434, %v993, 0
  %v1004 = vsel %vm434, %v995, 0
  %1006 = vmatprep.subr.mxu0 0.0
  %1007 = vmatpush1.msra.mxu0 0.0
  %1008 = vmatprep.subr.mxu0 0.0
  %1009 = vmatpush1.msra.mxu0 0.0
  %1010 = vmatprep.subr.mxu0 0.0
  %1011 = vmatpush1.msra.mxu0 0.0
  %1012 = vmatprep.subr.mxu0 0.0
  %1013 = vmatpush1.msra.mxu0 0.0
  %1014 = vmatprep.subr.mxu0 0.0
  %1015 = vmatpush1.msra.mxu0 0.0
  %1016 = vmatprep.subr.mxu0 0.0
  %1017 = vmatpush1.msra.mxu0 0.0
  %1018 = vmatprep.subr.mxu0 0.0
  %1019 = vmatpush1.msra.mxu0 0.0
  %1020 = vmatprep.subr.mxu0 0.0
  %1021 = vmatpush1.msra.mxu0 0.0
  %1022 = vmatprep.subr.mxu0 0.0
  %1023 = vmatpush1.msra.mxu0 0.0
  %1024 = vmatprep.subr.mxu0 0.0
  %1025 = vmatpush1.msra.mxu0 0.0
  %1026 = vmatprep.subr.mxu0 0.0
  %1027 = vmatpush1.msra.mxu0 0.0
  %1028 = vmatprep.subr.mxu0 0.0
  %1029 = vmatpush1.msra.mxu0 0.0
  %1030 = vmatprep.subr.mxu0 0.0
  %1031 = vmatpush1.msra.mxu0 0.0
  %1032 = vmatprep.subr.mxu0 0.0
  %1033 = vmatpush1.msra.mxu0 0.0
  %1034 = vmatprep.subr.mxu0 %v283
  %1035 = vmatpush1.msra.mxu0 %v282
  %1036 = vmatprep.subr.mxu0 %v281
  %1037 = vmatpush1.msra.mxu0 %v280
  %1038 = vmatprep.subr.mxu0 0.0
  %1039 = vmatpush2.msra.mxu0 0.0
  %1040 = vmatprep.subr.mxu0 0.0
  %1041 = vmatpush2.msra.mxu0 0.0
  %1042 = vmatprep.subr.mxu0 0.0
  %1043 = vmatpush2.msra.mxu0 0.0
  %1044 = vmatprep.subr.mxu0 0.0
  %1045 = vmatpush2.msra.mxu0 0.0
  %1046 = vmatprep.subr.mxu0 0.0
  %1047 = vmatpush2.msra.mxu0 0.0
  %1048 = vmatprep.subr.mxu0 0.0
  %1049 = vmatpush2.msra.mxu0 0.0
  %1050 = vmatprep.subr.mxu0 0.0
  %1051 = vmatpush2.msra.mxu0 0.0
  %1052 = vmatprep.subr.mxu0 0.0
  %1053 = vmatpush2.msra.mxu0 0.0
  %1054 = vmatprep.subr.mxu0 0.0
  %1055 = vmatpush2.msra.mxu0 0.0
  %1056 = vmatprep.subr.mxu0 0.0
  %1057 = vmatpush2.msra.mxu0 0.0
  %1058 = vmatprep.subr.mxu0 0.0
  %1059 = vmatpush2.msra.mxu0 0.0
  %1060 = vmatprep.subr.mxu0 0.0
  %1061 = vmatpush2.msra.mxu0 0.0
  %1062 = vmatprep.subr.mxu0 0.0
  %1063 = vmatpush2.msra.mxu0 0.0
  %1064 = vmatprep.subr.mxu0 0.0
  %1065 = vmatpush2.msra.mxu0 0.0
  %1066 = vmatprep.subr.mxu0 0.0
  %1067 = vmatpush2.msra.mxu0 0.0
  %1068 = vmatprep.subr.mxu0 0.0
  %1069 = vmatpush2.msra.mxu0 0.0
  %1070 = vmatprep.mubr.f32.mxu0 0.0
  %1071 = vmatmul.mubr.f32.gmra.mxu0 %v1001
  %v1072 = vpop.f32.mrf.mxu0
  %v1073 = vadd.f32 0.0, %v1072
  %v1074 = vpop.f32.mrf.mxu0
  %v1075 = vadd.f32 0.0, %v1074
  %1076 = vmatprep.mubr.f32.mxu0 0.0
  %1077 = vmatmul.mubr.f32.gmra.mxu0 %v1004
  %v1078 = vpop.f32.mrf.mxu0
  %v1079 = vadd.f32 0.0, %v1078
  %v1080 = vpop.f32.mrf.mxu0
  %v1081 = vadd.f32 0.0, %v1080
  %1082 = vdwg.mxu0
  %1085 = vrot.lane.b32.xlu0 %v997, 112
  %v1086 = vpop.permute.xlu0 %1085
  %1087 = vrot.lane.b32.xlu0 %v999, 112
  %v1088 = vpop.permute.xlu0 %1087
  %v1089 = vsel %vm434, %v1086, 0
  %v1091 = vsel %vm434, %v1088, 0
  %1093 = vmatprep.subr.mxu0 0.0
  %1094 = vmatpush1.msra.mxu0 0.0
  %1095 = vmatprep.subr.mxu0 0.0
  %1096 = vmatpush1.msra.mxu0 0.0
  %1097 = vmatprep.subr.mxu0 0.0
  %1098 = vmatpush1.msra.mxu0 0.0
  %1099 = vmatprep.subr.mxu0 0.0
  %1100 = vmatpush1.msra.mxu0 0.0
  %1101 = vmatprep.subr.mxu0 0.0
  %1102 = vmatpush1.msra.mxu0 0.0
  %1103 = vmatprep.subr.mxu0 0.0
  %1104 = vmatpush1.msra.mxu0 0.0
  %1105 = vmatprep.subr.mxu0 0.0
  %1106 = vmatpush1.msra.mxu0 0.0
  %1107 = vmatprep.subr.mxu0 0.0
  %1108 = vmatpush1.msra.mxu0 0.0
  %1109 = vmatprep.subr.mxu0 0.0
  %1110 = vmatpush1.msra.mxu0 0.0
  %1111 = vmatprep.subr.mxu0 0.0
  %1112 = vmatpush1.msra.mxu0 0.0
  %1113 = vmatprep.subr.mxu0 0.0
  %1114 = vmatpush1.msra.mxu0 0.0
  %1115 = vmatprep.subr.mxu0 0.0
  %1116 = vmatpush1.msra.mxu0 0.0
  %1117 = vmatprep.subr.mxu0 0.0
  %1118 = vmatpush1.msra.mxu0 0.0
  %1119 = vmatprep.subr.mxu0 0.0
  %1120 = vmatpush1.msra.mxu0 0.0
  %1121 = vmatprep.subr.mxu0 %v287
  %1122 = vmatpush1.msra.mxu0 %v286
  %1123 = vmatprep.subr.mxu0 %v285
  %1124 = vmatpush1.msra.mxu0 %v284
  %1125 = vmatprep.subr.mxu0 0.0
  %1126 = vmatpush2.msra.mxu0 0.0
  %1127 = vmatprep.subr.mxu0 0.0
  %1128 = vmatpush2.msra.mxu0 0.0
  %1129 = vmatprep.subr.mxu0 0.0
  %1130 = vmatpush2.msra.mxu0 0.0
  %1131 = vmatprep.subr.mxu0 0.0
  %1132 = vmatpush2.msra.mxu0 0.0
  %1133 = vmatprep.subr.mxu0 0.0
  %1134 = vmatpush2.msra.mxu0 0.0
  %1135 = vmatprep.subr.mxu0 0.0
  %1136 = vmatpush2.msra.mxu0 0.0
  %1137 = vmatprep.subr.mxu0 0.0
  %1138 = vmatpush2.msra.mxu0 0.0
  %1139 = vmatprep.subr.mxu0 0.0
  %1140 = vmatpush2.msra.mxu0 0.0
  %1141 = vmatprep.subr.mxu0 0.0
  %1142 = vmatpush2.msra.mxu0 0.0
  %1143 = vmatprep.subr.mxu0 0.0
  %1144 = vmatpush2.msra.mxu0 0.0
  %1145 = vmatprep.subr.mxu0 0.0
  %1146 = vmatpush2.msra.mxu0 0.0
  %1147 = vmatprep.subr.mxu0 0.0
  %1148 = vmatpush2.msra.mxu0 0.0
  %1149 = vmatprep.subr.mxu0 0.0
  %1150 = vmatpush2.msra.mxu0 0.0
  %1151 = vmatprep.subr.mxu0 0.0
  %1152 = vmatpush2.msra.mxu0 0.0
  %1153 = vmatprep.subr.mxu0 0.0
  %1154 = vmatpush2.msra.mxu0 0.0
  %1155 = vmatprep.subr.mxu0 0.0
  %1156 = vmatpush2.msra.mxu0 0.0
  %1157 = vmatprep.mubr.f32.mxu0 0.0
  %1158 = vmatmul.mubr.f32.gmra.mxu0 %v1089
  %v1159 = vpop.f32.mrf.mxu0
  %v1160 = vadd.f32 0.0, %v1159
  %v1161 = vpop.f32.mrf.mxu0
  %v1162 = vadd.f32 0.0, %v1161
  %1163 = vmatprep.mubr.f32.mxu0 0.0
  %1164 = vmatmul.mubr.f32.gmra.mxu0 %v1091
  %v1165 = vpop.f32.mrf.mxu0
  %v1166 = vadd.f32 0.0, %v1165
  %v1167 = vpop.f32.mrf.mxu0
  %v1168 = vadd.f32 0.0, %v1167
  %1169 = vdwg.mxu0
  %v1170 = vmul.f32 %v1073, %v1160
  %v1171 = vmul.f32 %v1075, %v1162
  %v1172 = vmul.f32 %v1079, %v1166
  %v1173 = vmul.f32 %v1081, %v1168
  %1174 = vmatprep.subr.mxu0 0.0
  %1175 = vmatpush1.msra.mxu0 0.0
  %1176 = vmatprep.subr.mxu0 0.0
  %1177 = vmatpush1.msra.mxu0 0.0
  %1178 = vmatprep.subr.mxu0 0.0
  %1179 = vmatpush1.msra.mxu0 0.0
  %1180 = vmatprep.subr.mxu0 0.0
  %1181 = vmatpush1.msra.mxu0 0.0
  %1182 = vmatprep.subr.mxu0 0.0
  %1183 = vmatpush1.msra.mxu0 0.0
  %1184 = vmatprep.subr.mxu0 0.0
  %1185 = vmatpush1.msra.mxu0 0.0
  %1186 = vmatprep.subr.mxu0 0.0
  %1187 = vmatpush1.msra.mxu0 0.0
  %1188 = vmatprep.subr.mxu0 0.0
  %1189 = vmatpush1.msra.mxu0 0.0
  %1190 = vmatprep.subr.mxu0 0.0
  %1191 = vmatpush1.msra.mxu0 0.0
  %1192 = vmatprep.subr.mxu0 0.0
  %1193 = vmatpush1.msra.mxu0 0.0
  %1194 = vmatprep.subr.mxu0 0.0
  %1195 = vmatpush1.msra.mxu0 0.0
  %1196 = vmatprep.subr.mxu0 0.0
  %1197 = vmatpush1.msra.mxu0 0.0
  %1198 = vmatprep.subr.mxu0 0.0
  %1199 = vmatpush1.msra.mxu0 0.0
  %1200 = vmatprep.subr.mxu0 0.0
  %1201 = vmatpush1.msra.mxu0 0.0
  %1202 = vmatprep.subr.mxu0 %v1173
  %1203 = vmatpush1.msra.mxu0 %v1172
  %1204 = vmatprep.subr.mxu0 %v1171
  %1205 = vmatpush1.msra.mxu0 %v1170
  %1206 = vmatprep.subr.mxu0 0.0
  %1207 = vmatpush2.msra.mxu0 0.0
  %1208 = vmatprep.subr.mxu0 0.0
  %1209 = vmatpush2.msra.mxu0 0.0
  %1210 = vmatprep.subr.mxu0 0.0
  %1211 = vmatpush2.msra.mxu0 0.0
  %1212 = vmatprep.subr.mxu0 0.0
  %1213 = vmatpush2.msra.mxu0 0.0
  %1214 = vmatprep.subr.mxu0 0.0
  %1215 = vmatpush2.msra.mxu0 0.0
  %1216 = vmatprep.subr.mxu0 0.0
  %1217 = vmatpush2.msra.mxu0 0.0
  %1218 = vmatprep.subr.mxu0 0.0
  %1219 = vmatpush2.msra.mxu0 0.0
  %1220 = vmatprep.subr.mxu0 0.0
  %1221 = vmatpush2.msra.mxu0 0.0
  %1222 = vmatprep.subr.mxu0 0.0
  %1223 = vmatpush2.msra.mxu0 0.0
  %1224 = vmatprep.subr.mxu0 0.0
  %1225 = vmatpush2.msra.mxu0 0.0
  %1226 = vmatprep.subr.mxu0 0.0
  %1227 = vmatpush2.msra.mxu0 0.0
  %1228 = vmatprep.subr.mxu0 0.0
  %1229 = vmatpush2.msra.mxu0 0.0
  %1230 = vmatprep.subr.mxu0 0.0
  %1231 = vmatpush2.msra.mxu0 0.0
  %1232 = vmatprep.subr.mxu0 0.0
  %1233 = vmatpush2.msra.mxu0 0.0
  %1234 = vmatprep.subr.mxu0 0.0
  %1235 = vmatpush2.msra.mxu0 0.0
  %1236 = vmatprep.subr.mxu0 0.0
  %1237 = vmatpush2.msra.mxu0 0.0
  %1238 = vmatprep.mubr.f32.mxu0 0.0
  %1239 = vmatmul.mubr.f32.gmra.mxu0 %v650
  %v1240 = vpop.f32.mrf.mxu0
  %v1241 = vadd.f32 %v612, %v1240
  %v1242 = vpop.f32.mrf.mxu0
  %v1243 = vadd.f32 %v612, %v1242
  %1244 = vmatprep.mubr.f32.mxu0 0.0
  %1245 = vmatmul.mubr.f32.gmra.mxu0 %v653
  %v1246 = vpop.f32.mrf.mxu0
  %v1247 = vadd.f32 %v617, %v1246
  %v1248 = vpop.f32.mrf.mxu0
  %v1249 = vadd.f32 %v617, %v1248
  %1250 = vmatprep.mubr.f32.mxu0 0.0
  %1251 = vmatmul.mubr.f32.gmra.mxu0 %v656
  %v1252 = vpop.f32.mrf.mxu0
  %v1253 = vadd.f32 %v622, %v1252
  %v1254 = vpop.f32.mrf.mxu0
  %v1255 = vadd.f32 %v622, %v1254
  %1256 = vmatprep.mubr.f32.mxu0 0.0
  %1257 = vmatmul.mubr.f32.gmra.mxu0 %v659
  %v1258 = vpop.f32.mrf.mxu0
  %v1259 = vadd.f32 %v627, %v1258
  %v1260 = vpop.f32.mrf.mxu0
  %v1261 = vadd.f32 %v627, %v1260
  %1262 = vmatprep.mubr.f32.mxu0 0.0
  %1263 = vmatmul.mubr.f32.gmra.mxu0 %v662
  %v1264 = vpop.f32.mrf.mxu0
  %v1265 = vadd.f32 %v632, %v1264
  %v1266 = vpop.f32.mrf.mxu0
  %v1267 = vadd.f32 %v632, %v1266
  %1268 = vmatprep.mubr.f32.mxu0 0.0
  %1269 = vmatmul.mubr.f32.gmra.mxu0 %v665
  %v1270 = vpop.f32.mrf.mxu0
  %v1271 = vadd.f32 %v637, %v1270
  %v1272 = vpop.f32.mrf.mxu0
  %v1273 = vadd.f32 %v637, %v1272
  %1274 = vmatprep.mubr.f32.mxu0 0.0
  %1275 = vmatmul.mubr.f32.gmra.mxu0 %v668
  %v1276 = vpop.f32.mrf.mxu0
  %v1277 = vadd.f32 %v642, %v1276
  %v1278 = vpop.f32.mrf.mxu0
  %v1279 = vadd.f32 %v642, %v1278
  %1280 = vmatprep.mubr.f32.mxu0 0.0
  %1281 = vmatmul.mubr.f32.gmra.mxu0 %v671
  %v1282 = vpop.f32.mrf.mxu0
  %v1283 = vadd.f32 %v647, %v1282
  %v1284 = vpop.f32.mrf.mxu0
  %v1285 = vadd.f32 %v647, %v1284
  %1286 = vdwg.mxu0
  %v1287 = vadd.f32 %v1241, 3.0
  %v1288 = vadd.f32 %v1243, 3.0
  %v1289 = vadd.f32 %v1247, 3.0
  %v1290 = vadd.f32 %v1249, 3.0
  %v1291 = vadd.f32 %v1253, 3.0
  %v1292 = vadd.f32 %v1255, 3.0
  %v1293 = vadd.f32 %v1259, 3.0
  %v1294 = vadd.f32 %v1261, 3.0
  %v1295 = vadd.f32 %v1265, 3.0
  %v1296 = vadd.f32 %v1267, 3.0
  %v1297 = vadd.f32 %v1271, 3.0
  %v1298 = vadd.f32 %v1273, 3.0
  %v1299 = vadd.f32 %v1277, 3.0
  %v1300 = vadd.f32 %v1279, 3.0
  %v1301 = vadd.f32 %v1283, 3.0
  %v1302 = vadd.f32 %v1285, 3.0
  %v1303 = vmax.f32 %v1287, 0.0
  %v1304 = vmax.f32 %v1288, 0.0
  %v1305 = vmax.f32 %v1289, 0.0
  %v1306 = vmax.f32 %v1290, 0.0
  %v1307 = vmax.f32 %v1291, 0.0
  %v1308 = vmax.f32 %v1292, 0.0
  %v1309 = vmax.f32 %v1293, 0.0
  %v1310 = vmax.f32 %v1294, 0.0
  %v1311 = vmax.f32 %v1295, 0.0
  %v1312 = vmax.f32 %v1296, 0.0
  %v1313 = vmax.f32 %v1297, 0.0
  %v1314 = vmax.f32 %v1298, 0.0
  %v1315 = vmax.f32 %v1299, 0.0
  %v1316 = vmax.f32 %v1300, 0.0
  %v1317 = vmax.f32 %v1301, 0.0
  %v1318 = vmax.f32 %v1302, 0.0
  %v1319 = vmin.f32 %v1303, 6.0
  %v1320 = vmin.f32 %v1304, 6.0
  %v1321 = vmin.f32 %v1305, 6.0
  %v1322 = vmin.f32 %v1306, 6.0
  %v1323 = vmin.f32 %v1307, 6.0
  %v1324 = vmin.f32 %v1308, 6.0
  %v1325 = vmin.f32 %v1309, 6.0
  %v1326 = vmin.f32 %v1310, 6.0
  %v1327 = vmin.f32 %v1311, 6.0
  %v1328 = vmin.f32 %v1312, 6.0
  %v1329 = vmin.f32 %v1313, 6.0
  %v1330 = vmin.f32 %v1314, 6.0
  %v1331 = vmin.f32 %v1315, 6.0
  %v1332 = vmin.f32 %v1316, 6.0
  %v1333 = vmin.f32 %v1317, 6.0
  %v1334 = vmin.f32 %v1318, 6.0
  %v1335 = vmul.f32 %v1319, 0.16666667
  %v1336 = vmul.f32 %v1320, 0.16666667
  %v1337 = vmul.f32 %v1321, 0.16666667
  %v1338 = vmul.f32 %v1322, 0.16666667
  %v1339 = vmul.f32 %v1323, 0.16666667
  %v1340 = vmul.f32 %v1324, 0.16666667
  %v1341 = vmul.f32 %v1325, 0.16666667
  %v1342 = vmul.f32 %v1326, 0.16666667
  %v1343 = vmul.f32 %v1327, 0.16666667
  %v1344 = vmul.f32 %v1328, 0.16666667
  %v1345 = vmul.f32 %v1329, 0.16666667
  %v1346 = vmul.f32 %v1330, 0.16666667
  %v1347 = vmul.f32 %v1331, 0.16666667
  %v1348 = vmul.f32 %v1332, 0.16666667
  %v1349 = vmul.f32 %v1333, 0.16666667
  %v1350 = vmul.f32 %v1334, 0.16666667
  %v1351 = vmul.f32 %v1241, %v1335
  %v1352 = vmul.f32 %v1243, %v1336
  %v1353 = vmul.f32 %v1247, %v1337
  %v1354 = vmul.f32 %v1249, %v1338
  %v1355 = vmul.f32 %v1253, %v1339
  %v1356 = vmul.f32 %v1255, %v1340
  %v1357 = vmul.f32 %v1259, %v1341
  %v1358 = vmul.f32 %v1261, %v1342
  %v1359 = vmul.f32 %v1265, %v1343
  %v1360 = vmul.f32 %v1267, %v1344
  %v1361 = vmul.f32 %v1271, %v1345
  %v1362 = vmul.f32 %v1273, %v1346
  %v1363 = vmul.f32 %v1277, %v1347
  %v1364 = vmul.f32 %v1279, %v1348
  %v1365 = vmul.f32 %v1283, %v1349
  %v1366 = vmul.f32 %v1285, %v1350
  %s1367 = scalar_lea.vmem %s7, 128
  %1368 = vst [vmem:[%s1367] sm:$0xff] %v1351
  %1369 = vst [vmem:[%s1367 + $0x8] sm:$0xff] %v1352
  %1370 = vst [vmem:[%s1367 + $0x10] sm:$0xff] %v1353
  %1371 = vst [vmem:[%s1367 + $0x18] sm:$0xff] %v1354
  %1372 = vst [vmem:[%s1367 + $0x20] sm:$0xff] %v1355
  %1373 = vst [vmem:[%s1367 + $0x28] sm:$0xff] %v1356
  %1374 = vst [vmem:[%s1367 + $0x30] sm:$0xff] %v1357
  %1375 = vst [vmem:[%s1367 + $0x38] sm:$0xff] %v1358
  %1376 = vst [vmem:[%s1367 + $0x40] sm:$0xff] %v1359
  %1377 = vst [vmem:[%s1367 + $0x48] sm:$0xff] %v1360
  %1378 = vst [vmem:[%s1367 + $0x50] sm:$0xff] %v1361
  %1379 = vst [vmem:[%s1367 + $0x58] sm:$0xff] %v1362
  %1380 = vst [vmem:[%s1367 + $0x60] sm:$0xff] %v1363
  %1381 = vst [vmem:[%s1367 + $0x68] sm:$0xff] %v1364
  %1382 = vst [vmem:[%s1367 + $0x70] sm:$0xff] %v1365
  %1383 = vst [vmem:[%s1367 + $0x78] sm:$0xff] %v1366
  // Predicated region
  $region30: #{st_joint_att_3channel.1} parent=0 // pred_check
    _
  $region31: #{st_joint_att_3channel.1} parent=0 // pred_check_branch
    %1385 = sbr.rel (0) target = $region33
  $region32: #{st_joint_att_3channel.1} parent=0 // pred_region
    _
  $region33: #{st_joint_att_3channel.1} parent=0 // pred_fallthru
    _
  // Predicated region
  $region34: #{st_joint_att_3channel.1} parent=0 // pred_check
    _
  $region35: #{st_joint_att_3channel.1} parent=0 // pred_check_branch
    %1387 = sbr.rel (0) target = $region37
  $region36: #{st_joint_att_3channel.1} parent=0 // pred_region
    _
  $region37: #{st_joint_att_3channel.1} parent=0 // pred_fallthru
    _

</llo_original>
